<compile_context>
chip_gen: v5e
topology: v5e:2x2
jax: 0.10.0
libtpu: 0.0.40
codegen_flags: <defaults>
</compile_context>

<pallas_src>
import jax
import jax.numpy as jnp
from jax.experimental import pallas as pl
from jax.experimental.pallas import tpu as pltpu

LANE = 128


def _round_up(x, m):
    return ((x + m - 1) // m) * m


def _leaky_relu(v, slope=0.1):
    return jnp.where(v >= 0, v, slope * v)


def mlp_kernel(x_ref, w1_ref, b1_ref, w2_ref, b2_ref,
               w3_ref, b3_ref, w4_ref, b4_ref, o_ref):
    # All tiles resident in VMEM; the whole 4-layer MLP runs on MXU/VPU without
    # touching HBM between layers. Matmuls accumulate in f32; activations and
    # bias adds stay f32 even if the matmul inputs are bf16.
    mm_dtype = w1_ref.dtype
    h = jnp.dot(x_ref[...], w1_ref[...], preferred_element_type=jnp.float32)
    h = _leaky_relu(h + b1_ref[...])
    h = jnp.dot(h.astype(mm_dtype), w2_ref[...], preferred_element_type=jnp.float32)
    h = _leaky_relu(h + b2_ref[...])
    h = jnp.dot(h.astype(mm_dtype), w3_ref[...], preferred_element_type=jnp.float32)
    h = _leaky_relu(h + b3_ref[...])
    h = jnp.dot(h.astype(mm_dtype), w4_ref[...], preferred_element_type=jnp.float32)
    h = _leaky_relu(h + b4_ref[...])
    o_ref[...] = h.astype(o_ref.dtype)


def noise_generator_forward(x, params, *, block_b=256, matmul_dtype=jnp.float32):
    """x: [B, input_size] f32; params: dict of w1..w4 ([in,out]) and b1..b4 ([1,out])."""
    B, in_features = x.shape
    hidden = params["w1"].shape[1]
    latent = params["w4"].shape[1]

    # --- lane-dense output: pad last layer's output dim to a multiple of 128 ---
    latent_pad = _round_up(max(latent, LANE), LANE)
    w4 = jnp.pad(params["w4"], ((0, 0), (0, latent_pad - latent)))
    b4 = jnp.pad(params["b4"], ((0, 0), (0, latent_pad - latent)))

    # --- matmul input dtype (weights + activations); biases / accum stay f32 ---
    x_mm = x.astype(matmul_dtype)
    w1 = params["w1"].astype(matmul_dtype)
    w2 = params["w2"].astype(matmul_dtype)
    w3 = params["w3"].astype(matmul_dtype)
    w4 = w4.astype(matmul_dtype)
    b1, b2, b3 = params["b1"], params["b2"], params["b3"]

    # --- batch tiling: TB rows per grid step, batch padded to a multiple of TB ---
    tb = min(block_b, _round_up(B, 8))
    b_pad = _round_up(B, tb)
    if b_pad != B:
        x_mm = jnp.pad(x_mm, ((0, b_pad - B), (0, 0)))
    grid = (b_pad // tb,)

    resident = lambda i: (0, 0)          # weights/biases: same block every step
    in_specs = [
        pl.BlockSpec((tb, in_features), lambda i: (i, 0)),   # x tile (pipelined)
        pl.BlockSpec((in_features, hidden), resident),       # w1
        pl.BlockSpec((1, hidden), resident),                 # b1
        pl.BlockSpec((hidden, hidden), resident),            # w2
        pl.BlockSpec((1, hidden), resident),                 # b2
        pl.BlockSpec((hidden, hidden), resident),            # w3
        pl.BlockSpec((1, hidden), resident),                 # b3
        pl.BlockSpec((hidden, latent_pad), resident),        # w4 (padded)
        pl.BlockSpec((1, latent_pad), resident),             # b4 (padded)
    ]
    out_specs = pl.BlockSpec((tb, latent_pad), lambda i: (i, 0))

    itemsize = jnp.dtype(matmul_dtype).itemsize
    flops = 2 * b_pad * (in_features * hidden
                         + 2 * hidden * hidden
                         + hidden * latent_pad)
    bytes_accessed = (b_pad * in_features * itemsize                     # x
                      + (in_features * hidden + 2 * hidden * hidden
                         + hidden * latent_pad) * itemsize               # weights
                      + (3 * hidden + latent_pad) * 4                    # biases (f32)
                      + b_pad * latent_pad * 4)                          # out (f32)

    out = pl.pallas_call(
        mlp_kernel,
        out_shape=jax.ShapeDtypeStruct((b_pad, latent_pad), jnp.float32),
        grid=grid,
        in_specs=in_specs,
        out_specs=out_specs,
        compiler_params=pltpu.CompilerParams(
            dimension_semantics=("parallel",)),
        cost_estimate=pl.CostEstimate(
            flops=flops, transcendentals=0, bytes_accessed=bytes_accessed),
    )(x_mm, w1, b1, w2, b2, w3, b3, w4, b4)

    return out[:B, :latent]


def init_params(key, input_size, hidden_dim, latent_dim):
    """Deterministic init mirroring nn.Linear's uniform(-1/sqrt(fan_in), 1/sqrt(fan_in)).

    Weights are stored [in_features, out_features] (transposed vs PyTorch's
    nn.Linear [out, in]); biases as [1, out_features] so they broadcast over
    the batch dimension inside the kernel.
    """
    dims = [(input_size, hidden_dim),
            (hidden_dim, hidden_dim),
            (hidden_dim, hidden_dim),
            (hidden_dim, latent_dim)]
    params = {}
    for i, (fan_in, fan_out) in enumerate(dims, start=1):
        key, kw, kb = jax.random.split(key, 3)
        bound = 1.0 / jnp.sqrt(float(fan_in))
        params[f"w{i}"] = jax.random.uniform(
            kw, (fan_in, fan_out), jnp.float32, -bound, bound)
        params[f"b{i}"] = jax.random.uniform(
            kb, (1, fan_out), jnp.float32, -bound, bound)
    return params


def reference_forward(x, params):
    # Matches the PyTorch module: leaky_relu(0.1) after every layer, incl. lin4.
    h = x
    for i in range(1, 5):
        h = jnp.dot(h, params[f"w{i}"], precision=jax.lax.Precision.HIGHEST)
        h = h + params[f"b{i}"]
        h = jnp.where(h >= 0, h, 0.1 * h)
    return h


if __name__ == "__main__":
    # Small shapes consistent with the module: input_size=64, latent_dim=10,
    # hidden_dim kept small (128); batch big enough to exercise the grid.
    B, INPUT_SIZE, HIDDEN_DIM, LATENT_DIM = 512, 64, 128, 10

    key = jax.random.PRNGKey(0)
    key, kx = jax.random.split(key)
    x = jax.random.normal(kx, (B, INPUT_SIZE), jnp.float32)
    params = init_params(key, INPUT_SIZE, HIDDEN_DIM, LATENT_DIM)

    out = noise_generator_forward(x, params)          # f32 matmuls (default)
    out = jax.block_until_ready(out)

    ref = reference_forward(x, params)
    assert out.shape == (B, LATENT_DIM)
    assert jnp.allclose(out, ref, atol=1e-3, rtol=1e-3), float(jnp.max(jnp.abs(out - ref)))

    # Also exercise a batch that does not divide the block size (padding path).
    out_small = jax.block_until_ready(noise_generator_forward(x[:13], params))
    assert out_small.shape == (13, LATENT_DIM)
    assert jnp.allclose(out_small, ref[:13], atol=1e-3, rtol=1e-3)

    print("KERNEL_OK")
</pallas_src>

<mosaic_0001>
module attributes {stable_mosaic.version = 11 : i64} {
  func.func @mlp_kernel(%arg0: i32, %arg1: memref<256x64xf32, #tpu.memory_space<vmem>>, %arg2: memref<64x128xf32, #tpu.memory_space<vmem>>, %arg3: memref<1x128xf32, #tpu.memory_space<vmem>>, %arg4: memref<128x128xf32, #tpu.memory_space<vmem>>, %arg5: memref<1x128xf32, #tpu.memory_space<vmem>>, %arg6: memref<128x128xf32, #tpu.memory_space<vmem>>, %arg7: memref<1x128xf32, #tpu.memory_space<vmem>>, %arg8: memref<128x128xf32, #tpu.memory_space<vmem>>, %arg9: memref<1x128xf32, #tpu.memory_space<vmem>>, %arg10: memref<256x128xf32, #tpu.memory_space<vmem>>) attributes {dimension_semantics = [#tpu.dimension_semantics<parallel>], iteration_bounds = array<i64: 2>, scalar_prefetch = 0 : i64, scratch_operands = 0 : i64, tpu.core_type = #tpu.core_type<tc>, window_params = [{transform_indices = @transform_0, window_bounds = array<i64: 256, 64>}, {pipeline_mode = #tpu.pipeline_mode<synchronous>, transform_indices = @transform_1, window_bounds = array<i64: 64, 128>}, {pipeline_mode = #tpu.pipeline_mode<synchronous>, transform_indices = @transform_2, window_bounds = array<i64: 1, 128>}, {pipeline_mode = #tpu.pipeline_mode<synchronous>, transform_indices = @transform_3, window_bounds = array<i64: 128, 128>}, {pipeline_mode = #tpu.pipeline_mode<synchronous>, transform_indices = @transform_4, window_bounds = array<i64: 1, 128>}, {pipeline_mode = #tpu.pipeline_mode<synchronous>, transform_indices = @transform_5, window_bounds = array<i64: 128, 128>}, {pipeline_mode = #tpu.pipeline_mode<synchronous>, transform_indices = @transform_6, window_bounds = array<i64: 1, 128>}, {pipeline_mode = #tpu.pipeline_mode<synchronous>, transform_indices = @transform_7, window_bounds = array<i64: 128, 128>}, {pipeline_mode = #tpu.pipeline_mode<synchronous>, transform_indices = @transform_8, window_bounds = array<i64: 1, 128>}, {transform_indices = @transform_9, window_bounds = array<i64: 256, 128>}]} {
    %c0 = arith.constant 0 : index
    %c0_0 = arith.constant 0 : index
    %0 = vector.load %arg1[%c0, %c0_0] : memref<256x64xf32, #tpu.memory_space<vmem>>, vector<256x64xf32>
    %c0_1 = arith.constant 0 : index
    %c0_2 = arith.constant 0 : index
    %1 = vector.load %arg2[%c0_1, %c0_2] : memref<64x128xf32, #tpu.memory_space<vmem>>, vector<64x128xf32>
    %cst = arith.constant dense<0.000000e+00> : vector<256x128xf32>
    %2 = tpu.matmul %0, %1, %cst {dimension_numbers = #tpu.dot_dimension_numbers<[1], [0], [0], [1], [0, 0, 1, 1], [], []>} : vector<256x64xf32>, vector<64x128xf32>, vector<256x128xf32> -> vector<256x128xf32>
    %c0_3 = arith.constant 0 : index
    %c0_4 = arith.constant 0 : index
    %3 = vector.load %arg3[%c0_3, %c0_4] : memref<1x128xf32, #tpu.memory_space<vmem>>, vector<1x128xf32>
    %4 = vector.broadcast %3 : vector<1x128xf32> to vector<256x128xf32>
    %5 = arith.addf %2, %4 : vector<256x128xf32>
    %cst_5 = arith.constant 0.000000e+00 : f32
    %6 = vector.broadcast %cst_5 : f32 to vector<256x128xf32>
    %7 = arith.cmpf oge, %5, %6 : vector<256x128xf32>
    %cst_6 = arith.constant 1.000000e-01 : f32
    %8 = vector.broadcast %cst_6 : f32 to vector<256x128xf32>
    %9 = arith.mulf %8, %5 : vector<256x128xf32>
    %10 = arith.select %7, %5, %9 : vector<256x128xi1>, vector<256x128xf32>
    %c0_7 = arith.constant 0 : index
    %c0_8 = arith.constant 0 : index
    %11 = vector.load %arg4[%c0_7, %c0_8] : memref<128x128xf32, #tpu.memory_space<vmem>>, vector<128x128xf32>
    %cst_9 = arith.constant dense<0.000000e+00> : vector<256x128xf32>
    %12 = tpu.matmul %10, %11, %cst_9 {dimension_numbers = #tpu.dot_dimension_numbers<[1], [0], [0], [1], [0, 0, 1, 1], [], []>} : vector<256x128xf32>, vector<128x128xf32>, vector<256x128xf32> -> vector<256x128xf32>
    %c0_10 = arith.constant 0 : index
    %c0_11 = arith.constant 0 : index
    %13 = vector.load %arg5[%c0_10, %c0_11] : memref<1x128xf32, #tpu.memory_space<vmem>>, vector<1x128xf32>
    %14 = vector.broadcast %13 : vector<1x128xf32> to vector<256x128xf32>
    %15 = arith.addf %12, %14 : vector<256x128xf32>
    %cst_12 = arith.constant 0.000000e+00 : f32
    %16 = vector.broadcast %cst_12 : f32 to vector<256x128xf32>
    %17 = arith.cmpf oge, %15, %16 : vector<256x128xf32>
    %cst_13 = arith.constant 1.000000e-01 : f32
    %18 = vector.broadcast %cst_13 : f32 to vector<256x128xf32>
    %19 = arith.mulf %18, %15 : vector<256x128xf32>
    %20 = arith.select %17, %15, %19 : vector<256x128xi1>, vector<256x128xf32>
    %c0_14 = arith.constant 0 : index
    %c0_15 = arith.constant 0 : index
    %21 = vector.load %arg6[%c0_14, %c0_15] : memref<128x128xf32, #tpu.memory_space<vmem>>, vector<128x128xf32>
    %cst_16 = arith.constant dense<0.000000e+00> : vector<256x128xf32>
    %22 = tpu.matmul %20, %21, %cst_16 {dimension_numbers = #tpu.dot_dimension_numbers<[1], [0], [0], [1], [0, 0, 1, 1], [], []>} : vector<256x128xf32>, vector<128x128xf32>, vector<256x128xf32> -> vector<256x128xf32>
    %c0_17 = arith.constant 0 : index
    %c0_18 = arith.constant 0 : index
    %23 = vector.load %arg7[%c0_17, %c0_18] : memref<1x128xf32, #tpu.memory_space<vmem>>, vector<1x128xf32>
    %24 = vector.broadcast %23 : vector<1x128xf32> to vector<256x128xf32>
    %25 = arith.addf %22, %24 : vector<256x128xf32>
    %cst_19 = arith.constant 0.000000e+00 : f32
    %26 = vector.broadcast %cst_19 : f32 to vector<256x128xf32>
    %27 = arith.cmpf oge, %25, %26 : vector<256x128xf32>
    %cst_20 = arith.constant 1.000000e-01 : f32
    %28 = vector.broadcast %cst_20 : f32 to vector<256x128xf32>
    %29 = arith.mulf %28, %25 : vector<256x128xf32>
    %30 = arith.select %27, %25, %29 : vector<256x128xi1>, vector<256x128xf32>
    %c0_21 = arith.constant 0 : index
    %c0_22 = arith.constant 0 : index
    %31 = vector.load %arg8[%c0_21, %c0_22] : memref<128x128xf32, #tpu.memory_space<vmem>>, vector<128x128xf32>
    %cst_23 = arith.constant dense<0.000000e+00> : vector<256x128xf32>
    %32 = tpu.matmul %30, %31, %cst_23 {dimension_numbers = #tpu.dot_dimension_numbers<[1], [0], [0], [1], [0, 0, 1, 1], [], []>} : vector<256x128xf32>, vector<128x128xf32>, vector<256x128xf32> -> vector<256x128xf32>
    %c0_24 = arith.constant 0 : index
    %c0_25 = arith.constant 0 : index
    %33 = vector.load %arg9[%c0_24, %c0_25] : memref<1x128xf32, #tpu.memory_space<vmem>>, vector<1x128xf32>
    %34 = vector.broadcast %33 : vector<1x128xf32> to vector<256x128xf32>
    %35 = arith.addf %32, %34 : vector<256x128xf32>
    %cst_26 = arith.constant 0.000000e+00 : f32
    %36 = vector.broadcast %cst_26 : f32 to vector<256x128xf32>
    %37 = arith.cmpf oge, %35, %36 : vector<256x128xf32>
    %cst_27 = arith.constant 1.000000e-01 : f32
    %38 = vector.broadcast %cst_27 : f32 to vector<256x128xf32>
    %39 = arith.mulf %38, %35 : vector<256x128xf32>
    %40 = arith.select %37, %35, %39 : vector<256x128xi1>, vector<256x128xf32>
    %c0_28 = arith.constant 0 : index
    %c0_29 = arith.constant 0 : index
    %41 = vector.load %arg10[%c0_28, %c0_29] : memref<256x128xf32, #tpu.memory_space<vmem>>, vector<256x128xf32>
    tpu.vector_store %arg10[%c0_28, %c0_29], %40 {strides = array<i32>} : memref<256x128xf32, #tpu.memory_space<vmem>>, vector<256x128xf32>,
    return
  }
  func.func @transform_0(%arg0: i32) -> (i32, i32) {
    %c0_i32 = arith.constant 0 : i32
    %c0_i32_0 = arith.constant 0 : i32
    return %arg0, %c0_i32 : i32, i32
  }
  func.func @transform_1(%arg0: i32) -> (i32, i32) {
    %c0_i32 = arith.constant 0 : i32
    %c0_i32_0 = arith.constant 0 : i32
    %c0_i32_1 = arith.constant 0 : i32
    return %c0_i32, %c0_i32_0 : i32, i32
  }
  func.func @transform_2(%arg0: i32) -> (i32, i32) {
    %c0_i32 = arith.constant 0 : i32
    %c0_i32_0 = arith.constant 0 : i32
    %c0_i32_1 = arith.constant 0 : i32
    return %c0_i32, %c0_i32_0 : i32, i32
  }
  func.func @transform_3(%arg0: i32) -> (i32, i32) {
    %c0_i32 = arith.constant 0 : i32
    %c0_i32_0 = arith.constant 0 : i32
    %c0_i32_1 = arith.constant 0 : i32
    return %c0_i32, %c0_i32_0 : i32, i32
  }
  func.func @transform_4(%arg0: i32) -> (i32, i32) {
    %c0_i32 = arith.constant 0 : i32
    %c0_i32_0 = arith.constant 0 : i32
    %c0_i32_1 = arith.constant 0 : i32
    return %c0_i32, %c0_i32_0 : i32, i32
  }
  func.func @transform_5(%arg0: i32) -> (i32, i32) {
    %c0_i32 = arith.constant 0 : i32
    %c0_i32_0 = arith.constant 0 : i32
    %c0_i32_1 = arith.constant 0 : i32
    return %c0_i32, %c0_i32_0 : i32, i32
  }
  func.func @transform_6(%arg0: i32) -> (i32, i32) {
    %c0_i32 = arith.constant 0 : i32
    %c0_i32_0 = arith.constant 0 : i32
    %c0_i32_1 = arith.constant 0 : i32
    return %c0_i32, %c0_i32_0 : i32, i32
  }
  func.func @transform_7(%arg0: i32) -> (i32, i32) {
    %c0_i32 = arith.constant 0 : i32
    %c0_i32_0 = arith.constant 0 : i32
    %c0_i32_1 = arith.constant 0 : i32
    return %c0_i32, %c0_i32_0 : i32, i32
  }
  func.func @transform_8(%arg0: i32) -> (i32, i32) {
    %c0_i32 = arith.constant 0 : i32
    %c0_i32_0 = arith.constant 0 : i32
    %c0_i32_1 = arith.constant 0 : i32
    return %c0_i32, %c0_i32_0 : i32, i32
  }
  func.func @transform_9(%arg0: i32) -> (i32, i32) {
    %c0_i32 = arith.constant 0 : i32
    %c0_i32_0 = arith.constant 0 : i32
    return %arg0, %c0_i32 : i32, i32
  }
}

</mosaic_0001>

<llo_original>
// kernel: tpu_custom_call.1
$region0: #{tpu_custom_call.1}
  #allocation0 [shape = 'u32[]', space=smem, size = 0x4, offset = 0x4, fixed_abs, tag = 'smem constant byte address 0x4 - core index']
  #allocation1 [shape = 'u32[72,128]{1,0:T(1,128)}', space=vmem, size = 0x9000, scoped, tag = 'internal scratch']
  %s0 = inlined_call_operand.vmem [shape: f32[512,64], index: 0, kind: input, shape index: {}]
  %s1 = inlined_call_operand.vmem [shape: f32[64,128], index: 1, kind: input, shape index: {}]
  %s2 = inlined_call_operand.vmem [shape: f32[1,128], index: 2, kind: input, shape index: {}]
  %s3 = inlined_call_operand.vmem [shape: f32[128,128], index: 3, kind: input, shape index: {}]
  %s4 = inlined_call_operand.vmem [shape: f32[1,128], index: 4, kind: input, shape index: {}]
  %s5 = inlined_call_operand.vmem [shape: f32[128,128], index: 5, kind: input, shape index: {}]
  %s6 = inlined_call_operand.vmem [shape: f32[1,128], index: 6, kind: input, shape index: {}]
  %s7 = inlined_call_operand.vmem [shape: f32[128,128], index: 7, kind: input, shape index: {}]
  %s8 = inlined_call_operand.vmem [shape: f32[1,128], index: 8, kind: input, shape index: {}]
  %s9 = inlined_call_operand.hbm [shape: f32[512,128], index: 9, kind: output, shape index: {}]
  %s10 = sld [smem:[#allocation0]]
  $region69: #{tpu_custom_call.1} parent=0
    _
  %s12 = ssub.s32 1, %s10
  %s13 = scalar_select 0, %s12, %s10
  $region1: #{tpu_custom_call.1} parent=0
    #allocation2 [shape = 'u8[262144]{0}', space=vmem, size = 0x40000, scoped, tag = 'output window, operand 0']
    #allocation3 [shape = 's32[2]{0}', space=sflag, size = 0x8, scoped, tag = 'scoped memory for tpu_custom_call.1']
    %14 = vsyncpa [#allocation3], 0
    %s15 = scalar_lea.sflag [#allocation3], 1
    %16 = vsyncpa %s15, 0
    loop: start=0, step=1, limit=4
    $region2: #{tpu_custom_call.1} parent=1 // loop_pre_header
      _
    $region3: #{tpu_custom_call.1} parent=1 // loop_header
      %s18 = sphi 0, %s22
      %p19 = scmp.ge.s32.totalorder %s18, 4
      %s28 = sphi 0, %s30
      %s31 = sphi 0, %s28
      %s32 = sphi 0, %s31
      %s48 = sphi 0, %s32
      %s52 = sphi 0, %s52
      %s54 = sphi 0, %s52
      %s55 = sphi 0, %s54
      %s69 = sphi 0, %s55
      %s73 = sphi 0, %s73
      %s75 = sphi 0, %s73
      %s76 = sphi 0, %s75
      %s90 = sphi 0, %s76
      %s94 = sphi 0, %s94
      %s96 = sphi 0, %s94
      %s97 = sphi 0, %s96
      %s111 = sphi 0, %s97
      %s115 = sphi 0, %s115
      %s117 = sphi 0, %s115
      %s118 = sphi 0, %s117
      %s132 = sphi 0, %s118
      %s136 = sphi 0, %s136
      %s138 = sphi 0, %s136
      %s139 = sphi 0, %s138
      %s153 = sphi 0, %s139
      %s157 = sphi 0, %s157
      %s159 = sphi 0, %s157
      %s160 = sphi 0, %s159
      %s174 = sphi 0, %s160
      %s178 = sphi 0, %s178
      %s180 = sphi 0, %s178
      %s181 = sphi 0, %s180
      %s195 = sphi 0, %s181
      %s199 = sphi 0, %s199
      %s201 = sphi 0, %s199
      %s202 = sphi 0, %s201
      %s216 = sphi 0, %s202
      %s222 = sphi 0, %s224
      %s225 = sphi 0, %s222
      %s226 = sphi 0, %s225
      %s242 = sphi 0, %s226
    $region4: #{tpu_custom_call.1} parent=1 // loop_header_branch
      %21 = sbr.rel (%p19) target = $region8
    $region5: #{tpu_custom_call.1} parent=1 // loop_body
      %s23 = ssub.s32 %s18, 1
      %s24 = ssub.s32 %s18, 2
      %s25 = sadd.s32 %s18, 1
      %s26 = ssub.s32 %s18, %s25
      %p27 = scmp.eq.s32.totalorder %s26, 0
      %s29 = sadd.s32 %s28, 1
      %s30 = scalar_select %p27, %s28, %s29
      %p33 = pneg %p27
      %p34 = scmp.eq.s32.totalorder %s18, 1
      %p35 = por %p33, %p34
      %p36 = scmp.ne.s32.totalorder %s28, %s31
      %p37 = scmp.eq.s32.totalorder %s18, 0
      %p38 = por %p36, %p37
      %p39 = scmp.ne.s32.totalorder %s28, %s31
      %p40 = scmp.eq.s32.totalorder %s23, 1
      %p41 = por %p39, %p40
      %p42 = scmp.ne.s32.totalorder %s31, %s32
      %p43 = scmp.eq.s32.totalorder %s23, 0
      %p44 = por %p42, %p43
      %p45 = scmp.ne.s32.totalorder %s31, %s32
      %p46 = scmp.eq.s32.totalorder %s24, 1
      %p47 = por %p45, %p46
      %p49 = scmp.ne.s32.totalorder %s32, %s48
      %p50 = scmp.eq.s32.totalorder %s24, 0
      %p51 = por %p49, %p50
      %s53 = sadd.s32 %s52, 1
      %p56 = scmp.eq.s32.totalorder %s18, 1
      %p57 = scmp.ne.s32.totalorder %s52, %s54
      %p58 = scmp.eq.s32.totalorder %s18, 0
      %p59 = por %p57, %p58
      %p60 = scmp.ne.s32.totalorder %s52, %s54
      %p61 = scmp.eq.s32.totalorder %s23, 1
      %p62 = por %p60, %p61
      %p63 = scmp.ne.s32.totalorder %s54, %s55
      %p64 = scmp.eq.s32.totalorder %s23, 0
      %p65 = por %p63, %p64
      %p66 = scmp.ne.s32.totalorder %s54, %s55
      %p67 = scmp.eq.s32.totalorder %s24, 1
      %p68 = por %p66, %p67
      %p70 = scmp.ne.s32.totalorder %s55, %s69
      %p71 = scmp.eq.s32.totalorder %s24, 0
      %p72 = por %p70, %p71
      %s74 = sadd.s32 %s73, 1
      %p77 = scmp.eq.s32.totalorder %s18, 1
      %p78 = scmp.ne.s32.totalorder %s73, %s75
      %p79 = scmp.eq.s32.totalorder %s18, 0
      %p80 = por %p78, %p79
      %p81 = scmp.ne.s32.totalorder %s73, %s75
      %p82 = scmp.eq.s32.totalorder %s23, 1
      %p83 = por %p81, %p82
      %p84 = scmp.ne.s32.totalorder %s75, %s76
      %p85 = scmp.eq.s32.totalorder %s23, 0
      %p86 = por %p84, %p85
      %p87 = scmp.ne.s32.totalorder %s75, %s76
      %p88 = scmp.eq.s32.totalorder %s24, 1
      %p89 = por %p87, %p88
      %p91 = scmp.ne.s32.totalorder %s76, %s90
      %p92 = scmp.eq.s32.totalorder %s24, 0
      %p93 = por %p91, %p92
      %s95 = sadd.s32 %s94, 1
      %p98 = scmp.eq.s32.totalorder %s18, 1
      %p99 = scmp.ne.s32.totalorder %s94, %s96
      %p100 = scmp.eq.s32.totalorder %s18, 0
      %p101 = por %p99, %p100
      %p102 = scmp.ne.s32.totalorder %s94, %s96
      %p103 = scmp.eq.s32.totalorder %s23, 1
      %p104 = por %p102, %p103
      %p105 = scmp.ne.s32.totalorder %s96, %s97
      %p106 = scmp.eq.s32.totalorder %s23, 0
      %p107 = por %p105, %p106
      %p108 = scmp.ne.s32.totalorder %s96, %s97
      %p109 = scmp.eq.s32.totalorder %s24, 1
      %p110 = por %p108, %p109
      %p112 = scmp.ne.s32.totalorder %s97, %s111
      %p113 = scmp.eq.s32.totalorder %s24, 0
      %p114 = por %p112, %p113
      %s116 = sadd.s32 %s115, 1
      %p119 = scmp.eq.s32.totalorder %s18, 1
      %p120 = scmp.ne.s32.totalorder %s115, %s117
      %p121 = scmp.eq.s32.totalorder %s18, 0
      %p122 = por %p120, %p121
      %p123 = scmp.ne.s32.totalorder %s115, %s117
      %p124 = scmp.eq.s32.totalorder %s23, 1
      %p125 = por %p123, %p124
      %p126 = scmp.ne.s32.totalorder %s117, %s118
      %p127 = scmp.eq.s32.totalorder %s23, 0
      %p128 = por %p126, %p127
      %p129 = scmp.ne.s32.totalorder %s117, %s118
      %p130 = scmp.eq.s32.totalorder %s24, 1
      %p131 = por %p129, %p130
      %p133 = scmp.ne.s32.totalorder %s118, %s132
      %p134 = scmp.eq.s32.totalorder %s24, 0
      %p135 = por %p133, %p134
      %s137 = sadd.s32 %s136, 1
      %p140 = scmp.eq.s32.totalorder %s18, 1
      %p141 = scmp.ne.s32.totalorder %s136, %s138
      %p142 = scmp.eq.s32.totalorder %s18, 0
      %p143 = por %p141, %p142
      %p144 = scmp.ne.s32.totalorder %s136, %s138
      %p145 = scmp.eq.s32.totalorder %s23, 1
      %p146 = por %p144, %p145
      %p147 = scmp.ne.s32.totalorder %s138, %s139
      %p148 = scmp.eq.s32.totalorder %s23, 0
      %p149 = por %p147, %p148
      %p150 = scmp.ne.s32.totalorder %s138, %s139
      %p151 = scmp.eq.s32.totalorder %s24, 1
      %p152 = por %p150, %p151
      %p154 = scmp.ne.s32.totalorder %s139, %s153
      %p155 = scmp.eq.s32.totalorder %s24, 0
      %p156 = por %p154, %p155
      %s158 = sadd.s32 %s157, 1
      %p161 = scmp.eq.s32.totalorder %s18, 1
      %p162 = scmp.ne.s32.totalorder %s157, %s159
      %p163 = scmp.eq.s32.totalorder %s18, 0
      %p164 = por %p162, %p163
      %p165 = scmp.ne.s32.totalorder %s157, %s159
      %p166 = scmp.eq.s32.totalorder %s23, 1
      %p167 = por %p165, %p166
      %p168 = scmp.ne.s32.totalorder %s159, %s160
      %p169 = scmp.eq.s32.totalorder %s23, 0
      %p170 = por %p168, %p169
      %p171 = scmp.ne.s32.totalorder %s159, %s160
      %p172 = scmp.eq.s32.totalorder %s24, 1
      %p173 = por %p171, %p172
      %p175 = scmp.ne.s32.totalorder %s160, %s174
      %p176 = scmp.eq.s32.totalorder %s24, 0
      %p177 = por %p175, %p176
      %s179 = sadd.s32 %s178, 1
      %p182 = scmp.eq.s32.totalorder %s18, 1
      %p183 = scmp.ne.s32.totalorder %s178, %s180
      %p184 = scmp.eq.s32.totalorder %s18, 0
      %p185 = por %p183, %p184
      %p186 = scmp.ne.s32.totalorder %s178, %s180
      %p187 = scmp.eq.s32.totalorder %s23, 1
      %p188 = por %p186, %p187
      %p189 = scmp.ne.s32.totalorder %s180, %s181
      %p190 = scmp.eq.s32.totalorder %s23, 0
      %p191 = por %p189, %p190
      %p192 = scmp.ne.s32.totalorder %s180, %s181
      %p193 = scmp.eq.s32.totalorder %s24, 1
      %p194 = por %p192, %p193
      %p196 = scmp.ne.s32.totalorder %s181, %s195
      %p197 = scmp.eq.s32.totalorder %s24, 0
      %p198 = por %p196, %p197
      %s200 = sadd.s32 %s199, 1
      %p203 = scmp.eq.s32.totalorder %s18, 1
      %p204 = scmp.ne.s32.totalorder %s199, %s201
      %p205 = scmp.eq.s32.totalorder %s18, 0
      %p206 = por %p204, %p205
      %p207 = scmp.ne.s32.totalorder %s199, %s201
      %p208 = scmp.eq.s32.totalorder %s23, 1
      %p209 = por %p207, %p208
      %p210 = scmp.ne.s32.totalorder %s201, %s202
      %p211 = scmp.eq.s32.totalorder %s23, 0
      %p212 = por %p210, %p211
      %p213 = scmp.ne.s32.totalorder %s201, %s202
      %p214 = scmp.eq.s32.totalorder %s24, 1
      %p215 = por %p213, %p214
      %p217 = scmp.ne.s32.totalorder %s202, %s216
      %p218 = scmp.eq.s32.totalorder %s24, 0
      %p219 = por %p217, %p218
      %s220 = ssub.s32 %s18, %s25
      %p221 = scmp.eq.s32.totalorder %s220, 0
      %s223 = sadd.s32 %s222, 1
      %s224 = scalar_select %p221, %s222, %s223
      %p227 = pneg %p221
      %p228 = scmp.eq.s32.totalorder %s18, 1
      %p229 = por %p227, %p228
      %p230 = scmp.ne.s32.totalorder %s222, %s225
      %p231 = scmp.eq.s32.totalorder %s18, 0
      %p232 = por %p230, %p231
      %p233 = scmp.ne.s32.totalorder %s222, %s225
      %p234 = scmp.eq.s32.totalorder %s23, 1
      %p235 = por %p233, %p234
      %p236 = scmp.ne.s32.totalorder %s225, %s226
      %p237 = scmp.eq.s32.totalorder %s23, 0
      %p238 = por %p236, %p237
      %p239 = scmp.ne.s32.totalorder %s225, %s226
      %p240 = scmp.eq.s32.totalorder %s24, 1
      %p241 = por %p239, %p240
      %p243 = scmp.ne.s32.totalorder %s226, %s242
      %p244 = scmp.eq.s32.totalorder %s24, 0
      %p245 = por %p243, %p244
      %p246 = scmp.le.s32.totalorder 1, %s18
      %p247 = scmp.lt.s32.totalorder %s18, 3
      %p248 = pnand %p246, %p247
      %p249 = pneg %p248
      // Predicated region
      $region9: #{tpu_custom_call.1} parent=5 // pred_check
        _
      $region10: #{tpu_custom_call.1} parent=5 // pred_check_branch
        %251 = sbr.rel (%p248) target = $region12
      $region11: #{tpu_custom_call.1} parent=5 // pred_region
        %s252 = ssub.s32 %s18, 1
        // Predicated region
        $region13: #{tpu_custom_call.1} parent=11 // pred_check
          %p253 = pneg %p65
        $region14: #{tpu_custom_call.1} parent=11 // pred_check_branch
          %255 = sbr.rel (%p253) target = $region16
        $region15: #{tpu_custom_call.1} parent=11 // pred_region
          _
        $region16: #{tpu_custom_call.1} parent=11 // pred_fallthru
          _
        // Predicated region
        $region17: #{tpu_custom_call.1} parent=11 // pred_check
          %p256 = pneg %p86
        $region18: #{tpu_custom_call.1} parent=11 // pred_check_branch
          %258 = sbr.rel (%p256) target = $region20
        $region19: #{tpu_custom_call.1} parent=11 // pred_region
          _
        $region20: #{tpu_custom_call.1} parent=11 // pred_fallthru
          _
        // Predicated region
        $region21: #{tpu_custom_call.1} parent=11 // pred_check
          %p259 = pneg %p107
        $region22: #{tpu_custom_call.1} parent=11 // pred_check_branch
          %261 = sbr.rel (%p259) target = $region24
        $region23: #{tpu_custom_call.1} parent=11 // pred_region
          _
        $region24: #{tpu_custom_call.1} parent=11 // pred_fallthru
          _
        // Predicated region
        $region25: #{tpu_custom_call.1} parent=11 // pred_check
          %p262 = pneg %p128
        $region26: #{tpu_custom_call.1} parent=11 // pred_check_branch
          %264 = sbr.rel (%p262) target = $region28
        $region27: #{tpu_custom_call.1} parent=11 // pred_region
          _
        $region28: #{tpu_custom_call.1} parent=11 // pred_fallthru
          _
        // Predicated region
        $region29: #{tpu_custom_call.1} parent=11 // pred_check
          %p265 = pneg %p149
        $region30: #{tpu_custom_call.1} parent=11 // pred_check_branch
          %267 = sbr.rel (%p265) target = $region32
        $region31: #{tpu_custom_call.1} parent=11 // pred_region
          _
        $region32: #{tpu_custom_call.1} parent=11 // pred_fallthru
          _
        // Predicated region
        $region33: #{tpu_custom_call.1} parent=11 // pred_check
          %p268 = pneg %p170
        $region34: #{tpu_custom_call.1} parent=11 // pred_check_branch
          %270 = sbr.rel (%p268) target = $region36
        $region35: #{tpu_custom_call.1} parent=11 // pred_region
          _
        $region36: #{tpu_custom_call.1} parent=11 // pred_fallthru
          _
        // Predicated region
        $region37: #{tpu_custom_call.1} parent=11 // pred_check
          %p271 = pneg %p191
        $region38: #{tpu_custom_call.1} parent=11 // pred_check_branch
          %273 = sbr.rel (%p271) target = $region40
        $region39: #{tpu_custom_call.1} parent=11 // pred_region
          _
        $region40: #{tpu_custom_call.1} parent=11 // pred_fallthru
          _
        // Predicated region
        $region41: #{tpu_custom_call.1} parent=11 // pred_check
          %p274 = pneg %p212
        $region42: #{tpu_custom_call.1} parent=11 // pred_check_branch
          %276 = sbr.rel (%p274) target = $region44
        $region43: #{tpu_custom_call.1} parent=11 // pred_region
          _
        $region44: #{tpu_custom_call.1} parent=11 // pred_fallthru
          _
      $region12: #{tpu_custom_call.1} parent=5 // pred_fallthru
        _
      %p277 = scmp.lt.s32.totalorder %s18, 2
      // Predicated region
      $region45: #{tpu_custom_call.1} parent=5 // pred_check
        %p278 = pneg %p277
      $region46: #{tpu_custom_call.1} parent=5 // pred_check_branch
        %280 = sbr.rel (%p278) target = $region48
      $region47: #{tpu_custom_call.1} parent=5 // pred_region
        // Predicated region
        $region49: #{tpu_custom_call.1} parent=47 // pred_check
          %p281 = pneg %p38
        $region50: #{tpu_custom_call.1} parent=47 // pred_check_branch
          %283 = sbr.rel (%p281) target = $region52
        $region51: #{tpu_custom_call.1} parent=47 // pred_region
          %s284 = smul.u32 32, %s18
          %p285 = scmp.lt.s32.totalorder %s284, 63
          %s286 = scalar_select %p285, %s284, 63
          %s287 = smul.addr %s286, 8
          %s288 = scalar_lea.vmem %s0, %s287
          %s289 = smul.u32 32, %s18
        $region52: #{tpu_custom_call.1} parent=47 // pred_fallthru
          _
      $region48: #{tpu_custom_call.1} parent=5 // pred_fallthru
        _
      %p290 = scmp.le.s32.totalorder 1, %s18
      %p291 = scmp.lt.s32.totalorder %s18, 3
      %p292 = pnand %p290, %p291
      %p293 = pneg %p292
      // Predicated region
      $region53: #{tpu_custom_call.1} parent=5 // pred_check
        _
      $region54: #{tpu_custom_call.1} parent=5 // pred_check_branch
        %295 = sbr.rel (%p292) target = $region56
      $region55: #{tpu_custom_call.1} parent=5 // pred_region
        %s296 = ssub.s32 %s18, 1
        %s297 = smul.u32 32, %s23
        %p298 = scmp.lt.s32.totalorder %s297, 63
        %s299 = scalar_select %p298, %s297, 63
        %s300 = smul.addr %s299, 8
        %s301 = scalar_lea.vmem %s0, %s300
        %p302 = pneg %p44
        %p303 = pneg %p41
        %p304 = pneg %p65
        %p305 = pneg %p62
        %p306 = pneg %p86
        %p307 = pneg %p83
        %p308 = pneg %p107
        %p309 = pneg %p104
        %p310 = pneg %p128
        %p311 = pneg %p125
        %p312 = pneg %p149
        %p313 = pneg %p146
        %p314 = pneg %p170
        %p315 = pneg %p167
        %p316 = pneg %p191
        %p317 = pneg %p188
        %p318 = pneg %p212
        %p319 = pneg %p209
        %p320 = pneg %p238
        %p321 = pneg %p235
        %s322 = sand.u32 %s225, 1
        %s323 = scalar_lea.sflag [#allocation3], %s322
        %s324 = sand.u32 %s225, 1
        %s325 = smul.addr %s324, 256
        %s326 = scalar_lea.vmem [#allocation2], %s325
        %s327 = smul.u32 32, %s23
        %p328 = scmp.lt.s32.totalorder %s327, 63
        %s329 = scalar_select %p328, %s327, 63
        %s330 = smul.addr %s329, 8
        %s331 = scalar_lea.vmem %s0, %s330
        %s332 = smul.u32 32, %s23
        %s333 = smul.u32 32, %s23
        %v334 = vld [vmem:[%s331] sm:$0xff]
        %v335 = vld [vmem:[%s331 + $0x8] sm:$0xff]
        %v336 = vld [vmem:[%s331 + $0x10] sm:$0xff]
        %v337 = vld [vmem:[%s331 + $0x18] sm:$0xff]
        %v338 = vld [vmem:[%s331 + $0x20] sm:$0xff]
        %v339 = vld [vmem:[%s331 + $0x28] sm:$0xff]
        %v340 = vld [vmem:[%s331 + $0x30] sm:$0xff]
        %v341 = vld [vmem:[%s331 + $0x38] sm:$0xff]
        %v342 = vld [vmem:[%s331 + $0x40] sm:$0xff]
        %v343 = vld [vmem:[%s331 + $0x48] sm:$0xff]
        %v344 = vld [vmem:[%s331 + $0x50] sm:$0xff]
        %v345 = vld [vmem:[%s331 + $0x58] sm:$0xff]
        %v346 = vld [vmem:[%s331 + $0x60] sm:$0xff]
        %v347 = vld [vmem:[%s331 + $0x68] sm:$0xff]
        %v348 = vld [vmem:[%s331 + $0x70] sm:$0xff]
        %v349 = vld [vmem:[%s331 + $0x78] sm:$0xff]
        %v350 = vld [vmem:[%s331 + $0x80] sm:$0xff]
        %v351 = vld [vmem:[%s331 + $0x88] sm:$0xff]
        %v352 = vld [vmem:[%s331 + $0x90] sm:$0xff]
        %v353 = vld [vmem:[%s331 + $0x98] sm:$0xff]
        %v354 = vld [vmem:[%s331 + $0xa0] sm:$0xff]
        %v355 = vld [vmem:[%s331 + $0xa8] sm:$0xff]
        %v356 = vld [vmem:[%s331 + $0xb0] sm:$0xff]
        %v357 = vld [vmem:[%s331 + $0xb8] sm:$0xff]
        %v358 = vld [vmem:[%s331 + $0xc0] sm:$0xff]
        %v359 = vld [vmem:[%s331 + $0xc8] sm:$0xff]
        %v360 = vld [vmem:[%s331 + $0xd0] sm:$0xff]
        %v361 = vld [vmem:[%s331 + $0xd8] sm:$0xff]
        %v362 = vld [vmem:[%s331 + $0xe0] sm:$0xff]
        %v363 = vld [vmem:[%s331 + $0xe8] sm:$0xff]
        %v364 = vld [vmem:[%s331 + $0xf0] sm:$0xff]
        %v365 = vld [vmem:[%s331 + $0xf8] sm:$0xff]
        %v366 = vld [vmem:[%s1] sm:$0xff]
        %v367 = vld [vmem:[%s1 + $0x8] sm:$0xff]
        %v368 = vld [vmem:[%s1 + $0x10] sm:$0xff]
        %v369 = vld [vmem:[%s1 + $0x18] sm:$0xff]
        %v370 = vld [vmem:[%s1 + $0x20] sm:$0xff]
        %v371 = vld [vmem:[%s1 + $0x28] sm:$0xff]
        %v372 = vld [vmem:[%s1 + $0x30] sm:$0xff]
        %v373 = vld [vmem:[%s1 + $0x38] sm:$0xff]
        %v374 = vld [vmem:[%s2] sm:$0x1]
        %v376 = vperm.slane %v374, 0
        %vm378 = vcmask 523264
        %v380 = vsel %vm378, %v334, 0
        %v383 = vsel %vm378, %v335, 0
        %v386 = vsel %vm378, %v336, 0
        %v389 = vsel %vm378, %v337, 0
        %v392 = vsel %vm378, %v338, 0
        %v395 = vsel %vm378, %v339, 0
        %v398 = vsel %vm378, %v340, 0
        %v401 = vsel %vm378, %v341, 0
        %v404 = vsel %vm378, %v342, 0
        %v407 = vsel %vm378, %v343, 0
        %v410 = vsel %vm378, %v344, 0
        %v413 = vsel %vm378, %v345, 0
        %v416 = vsel %vm378, %v346, 0
        %v419 = vsel %vm378, %v347, 0
        %v422 = vsel %vm378, %v348, 0
        %v425 = vsel %vm378, %v349, 0
        %v428 = vsel %vm378, %v350, 0
        %v431 = vsel %vm378, %v351, 0
        %v434 = vsel %vm378, %v352, 0
        %v437 = vsel %vm378, %v353, 0
        %v440 = vsel %vm378, %v354, 0
        %v443 = vsel %vm378, %v355, 0
        %v446 = vsel %vm378, %v356, 0
        %v449 = vsel %vm378, %v357, 0
        %v452 = vsel %vm378, %v358, 0
        %v455 = vsel %vm378, %v359, 0
        %v458 = vsel %vm378, %v360, 0
        %v461 = vsel %vm378, %v361, 0
        %v464 = vsel %vm378, %v362, 0
        %v467 = vsel %vm378, %v363, 0
        %v470 = vsel %vm378, %v364, 0
        %v473 = vsel %vm378, %v365, 0
        %475 = vmatpush.msra.mxu0 0.0
        %476 = vmatpush.msra.mxu0 0.0
        %477 = vmatpush.msra.mxu0 0.0
        %478 = vmatpush.msra.mxu0 0.0
        %479 = vmatpush.msra.mxu0 0.0
        %480 = vmatpush.msra.mxu0 0.0
        %481 = vmatpush.msra.mxu0 0.0
        %482 = vmatpush.msra.mxu0 0.0
        %483 = vmatpush.msra.mxu0 %v373
        %484 = vmatpush.msra.mxu0 %v372
        %485 = vmatpush.msra.mxu0 %v371
        %486 = vmatpush.msra.mxu0 %v370
        %487 = vmatpush.msra.mxu0 %v369
        %488 = vmatpush.msra.mxu0 %v368
        %489 = vmatpush.msra.mxu0 %v367
        %490 = vmatpush.msra.mxu0 %v366
        %491 = vmatmul.f32.gmra.mxu0 %v380
        %v492 = vpop.f32.mrf.mxu0
        %v493 = vadd.f32 %v376, %v492
        %494 = vmatmul.f32.gmra.mxu0 %v383
        %v495 = vpop.f32.mrf.mxu0
        %v496 = vadd.f32 %v376, %v495
        %497 = vmatmul.f32.gmra.mxu0 %v386
        %v498 = vpop.f32.mrf.mxu0
        %v499 = vadd.f32 %v376, %v498
        %500 = vmatmul.f32.gmra.mxu0 %v389
        %v501 = vpop.f32.mrf.mxu0
        %v502 = vadd.f32 %v376, %v501
        %503 = vmatmul.f32.gmra.mxu0 %v392
        %v504 = vpop.f32.mrf.mxu0
        %v505 = vadd.f32 %v376, %v504
        %506 = vmatmul.f32.gmra.mxu0 %v395
        %v507 = vpop.f32.mrf.mxu0
        %v508 = vadd.f32 %v376, %v507
        %509 = vmatmul.f32.gmra.mxu0 %v398
        %v510 = vpop.f32.mrf.mxu0
        %v511 = vadd.f32 %v376, %v510
        %512 = vmatmul.f32.gmra.mxu0 %v401
        %v513 = vpop.f32.mrf.mxu0
        %v514 = vadd.f32 %v376, %v513
        %515 = vmatmul.f32.gmra.mxu0 %v404
        %v516 = vpop.f32.mrf.mxu0
        %v517 = vadd.f32 %v376, %v516
        %518 = vmatmul.f32.gmra.mxu0 %v407
        %v519 = vpop.f32.mrf.mxu0
        %v520 = vadd.f32 %v376, %v519
        %521 = vmatmul.f32.gmra.mxu0 %v410
        %v522 = vpop.f32.mrf.mxu0
        %v523 = vadd.f32 %v376, %v522
        %524 = vmatmul.f32.gmra.mxu0 %v413
        %v525 = vpop.f32.mrf.mxu0
        %v526 = vadd.f32 %v376, %v525
        %527 = vmatmul.f32.gmra.mxu0 %v416
        %v528 = vpop.f32.mrf.mxu0
        %v529 = vadd.f32 %v376, %v528
        %530 = vmatmul.f32.gmra.mxu0 %v419
        %v531 = vpop.f32.mrf.mxu0
        %v532 = vadd.f32 %v376, %v531
        %533 = vmatmul.f32.gmra.mxu0 %v422
        %v534 = vpop.f32.mrf.mxu0
        %v535 = vadd.f32 %v376, %v534
        %536 = vmatmul.f32.gmra.mxu0 %v425
        %v537 = vpop.f32.mrf.mxu0
        %v538 = vadd.f32 %v376, %v537
        %539 = vmatmul.f32.gmra.mxu0 %v428
        %v540 = vpop.f32.mrf.mxu0
        %v541 = vadd.f32 %v376, %v540
        %542 = vmatmul.f32.gmra.mxu0 %v431
        %v543 = vpop.f32.mrf.mxu0
        %v544 = vadd.f32 %v376, %v543
        %545 = vmatmul.f32.gmra.mxu0 %v434
        %v546 = vpop.f32.mrf.mxu0
        %v547 = vadd.f32 %v376, %v546
        %548 = vmatmul.f32.gmra.mxu0 %v437
        %v549 = vpop.f32.mrf.mxu0
        %v550 = vadd.f32 %v376, %v549
        %551 = vmatmul.f32.gmra.mxu0 %v440
        %v552 = vpop.f32.mrf.mxu0
        %v553 = vadd.f32 %v376, %v552
        %554 = vmatmul.f32.gmra.mxu0 %v443
        %v555 = vpop.f32.mrf.mxu0
        %v556 = vadd.f32 %v376, %v555
        %557 = vmatmul.f32.gmra.mxu0 %v446
        %v558 = vpop.f32.mrf.mxu0
        %v559 = vadd.f32 %v376, %v558
        %560 = vmatmul.f32.gmra.mxu0 %v449
        %v561 = vpop.f32.mrf.mxu0
        %v562 = vadd.f32 %v376, %v561
        %563 = vmatmul.f32.gmra.mxu0 %v452
        %v564 = vpop.f32.mrf.mxu0
        %v565 = vadd.f32 %v376, %v564
        %566 = vmatmul.f32.gmra.mxu0 %v455
        %v567 = vpop.f32.mrf.mxu0
        %v568 = vadd.f32 %v376, %v567
        %569 = vmatmul.f32.gmra.mxu0 %v458
        %v570 = vpop.f32.mrf.mxu0
        %v571 = vadd.f32 %v376, %v570
        %572 = vmatmul.f32.gmra.mxu0 %v461
        %v573 = vpop.f32.mrf.mxu0
        %v574 = vadd.f32 %v376, %v573
        %575 = vmatmul.f32.gmra.mxu0 %v464
        %v576 = vpop.f32.mrf.mxu0
        %v577 = vadd.f32 %v376, %v576
        %578 = vmatmul.f32.gmra.mxu0 %v467
        %v579 = vpop.f32.mrf.mxu0
        %v580 = vadd.f32 %v376, %v579
        %581 = vmatmul.f32.gmra.mxu0 %v470
        %v582 = vpop.f32.mrf.mxu0
        %v583 = vadd.f32 %v376, %v582
        %584 = vmatmul.f32.gmra.mxu0 %v473
        %v585 = vpop.f32.mrf.mxu0
        %v586 = vadd.f32 %v376, %v585
        %587 = vdwg.mxu0
        %vm588 = vcmp.ge.f32.partialorder %v493, 0.0
        %vm589 = vcmp.ge.f32.partialorder %v496, 0.0
        %vm590 = vcmp.ge.f32.partialorder %v499, 0.0
        %vm591 = vcmp.ge.f32.partialorder %v502, 0.0
        %vm592 = vcmp.ge.f32.partialorder %v505, 0.0
        %vm593 = vcmp.ge.f32.partialorder %v508, 0.0
        %vm594 = vcmp.ge.f32.partialorder %v511, 0.0
        %vm595 = vcmp.ge.f32.partialorder %v514, 0.0
        %vm596 = vcmp.ge.f32.partialorder %v517, 0.0
        %vm597 = vcmp.ge.f32.partialorder %v520, 0.0
        %vm598 = vcmp.ge.f32.partialorder %v523, 0.0
        %vm599 = vcmp.ge.f32.partialorder %v526, 0.0
        %vm600 = vcmp.ge.f32.partialorder %v529, 0.0
        %vm601 = vcmp.ge.f32.partialorder %v532, 0.0
        %vm602 = vcmp.ge.f32.partialorder %v535, 0.0
        %vm603 = vcmp.ge.f32.partialorder %v538, 0.0
        %vm604 = vcmp.ge.f32.partialorder %v541, 0.0
        %vm605 = vcmp.ge.f32.partialorder %v544, 0.0
        %vm606 = vcmp.ge.f32.partialorder %v547, 0.0
        %vm607 = vcmp.ge.f32.partialorder %v550, 0.0
        %vm608 = vcmp.ge.f32.partialorder %v553, 0.0
        %vm609 = vcmp.ge.f32.partialorder %v556, 0.0
        %vm610 = vcmp.ge.f32.partialorder %v559, 0.0
        %vm611 = vcmp.ge.f32.partialorder %v562, 0.0
        %vm612 = vcmp.ge.f32.partialorder %v565, 0.0
        %vm613 = vcmp.ge.f32.partialorder %v568, 0.0
        %vm614 = vcmp.ge.f32.partialorder %v571, 0.0
        %vm615 = vcmp.ge.f32.partialorder %v574, 0.0
        %vm616 = vcmp.ge.f32.partialorder %v577, 0.0
        %vm617 = vcmp.ge.f32.partialorder %v580, 0.0
        %vm618 = vcmp.ge.f32.partialorder %v583, 0.0
        %vm619 = vcmp.ge.f32.partialorder %v586, 0.0
        %v620 = vmul.f32 %v493, 0.1
        %v621 = vmul.f32 %v496, 0.1
        %v622 = vmul.f32 %v499, 0.1
        %v623 = vmul.f32 %v502, 0.1
        %v624 = vmul.f32 %v505, 0.1
        %v625 = vmul.f32 %v508, 0.1
        %v626 = vmul.f32 %v511, 0.1
        %v627 = vmul.f32 %v514, 0.1
        %v628 = vmul.f32 %v517, 0.1
        %v629 = vmul.f32 %v520, 0.1
        %v630 = vmul.f32 %v523, 0.1
        %v631 = vmul.f32 %v526, 0.1
        %v632 = vmul.f32 %v529, 0.1
        %v633 = vmul.f32 %v532, 0.1
        %v634 = vmul.f32 %v535, 0.1
        %v635 = vmul.f32 %v538, 0.1
        %v636 = vmul.f32 %v541, 0.1
        %v637 = vmul.f32 %v544, 0.1
        %v638 = vmul.f32 %v547, 0.1
        %v639 = vmul.f32 %v550, 0.1
        %v640 = vmul.f32 %v553, 0.1
        %v641 = vmul.f32 %v556, 0.1
        %v642 = vmul.f32 %v559, 0.1
        %v643 = vmul.f32 %v562, 0.1
        %v644 = vmul.f32 %v565, 0.1
        %v645 = vmul.f32 %v568, 0.1
        %v646 = vmul.f32 %v571, 0.1
        %v647 = vmul.f32 %v574, 0.1
        %v648 = vmul.f32 %v577, 0.1
        %v649 = vmul.f32 %v580, 0.1
        %v650 = vmul.f32 %v583, 0.1
        %v651 = vmul.f32 %v586, 0.1
        %v652 = vsel %vm588, %v493, %v620
        %v653 = vsel %vm589, %v496, %v621
        %v654 = vsel %vm590, %v499, %v622
        %v655 = vsel %vm591, %v502, %v623
        %v656 = vsel %vm592, %v505, %v624
        %v657 = vsel %vm593, %v508, %v625
        %v658 = vsel %vm594, %v511, %v626
        %v659 = vsel %vm595, %v514, %v627
        %v660 = vsel %vm596, %v517, %v628
        %v661 = vsel %vm597, %v520, %v629
        %v662 = vsel %vm598, %v523, %v630
        %v663 = vsel %vm599, %v526, %v631
        %v664 = vsel %vm600, %v529, %v632
        %v665 = vsel %vm601, %v532, %v633
        %v666 = vsel %vm602, %v535, %v634
        %v667 = vsel %vm603, %v538, %v635
        %v668 = vsel %vm604, %v541, %v636
        %v669 = vsel %vm605, %v544, %v637
        %v670 = vsel %vm606, %v547, %v638
        %v671 = vsel %vm607, %v550, %v639
        %v672 = vsel %vm608, %v553, %v640
        %v673 = vsel %vm609, %v556, %v641
        %v674 = vsel %vm610, %v559, %v642
        %v675 = vsel %vm611, %v562, %v643
        %v676 = vsel %vm612, %v565, %v644
        %v677 = vsel %vm613, %v568, %v645
        %v678 = vsel %vm614, %v571, %v646
        %v679 = vsel %vm615, %v574, %v647
        %v680 = vsel %vm616, %v577, %v648
        %v681 = vsel %vm617, %v580, %v649
        %v682 = vsel %vm618, %v583, %v650
        %v683 = vsel %vm619, %v586, %v651
        %v684 = vld [vmem:[%s3] sm:$0xff]
        %v685 = vld [vmem:[%s3 + $0x8] sm:$0xff]
        %v686 = vld [vmem:[%s3 + $0x10] sm:$0xff]
        %v687 = vld [vmem:[%s3 + $0x18] sm:$0xff]
        %v688 = vld [vmem:[%s3 + $0x20] sm:$0xff]
        %v689 = vld [vmem:[%s3 + $0x28] sm:$0xff]
        %v690 = vld [vmem:[%s3 + $0x30] sm:$0xff]
        %v691 = vld [vmem:[%s3 + $0x38] sm:$0xff]
        %v692 = vld [vmem:[%s3 + $0x40] sm:$0xff]
        %v693 = vld [vmem:[%s3 + $0x48] sm:$0xff]
        %v694 = vld [vmem:[%s3 + $0x50] sm:$0xff]
        %v695 = vld [vmem:[%s3 + $0x58] sm:$0xff]
        %v696 = vld [vmem:[%s3 + $0x60] sm:$0xff]
        %v697 = vld [vmem:[%s3 + $0x68] sm:$0xff]
        %v698 = vld [vmem:[%s3 + $0x70] sm:$0xff]
        %v699 = vld [vmem:[%s3 + $0x78] sm:$0xff]
        %v700 = vld [vmem:[%s4] sm:$0x1]
        %v702 = vperm.slane %v700, 0
        %704 = vmatpush.msra.mxu0 %v699
        %705 = vmatpush.msra.mxu0 %v698
        %706 = vmatpush.msra.mxu0 %v697
        %707 = vmatpush.msra.mxu0 %v696
        %708 = vmatpush.msra.mxu0 %v695
        %709 = vmatpush.msra.mxu0 %v694
        %710 = vmatpush.msra.mxu0 %v693
        %711 = vmatpush.msra.mxu0 %v692
        %712 = vmatpush.msra.mxu0 %v691
        %713 = vmatpush.msra.mxu0 %v690
        %714 = vmatpush.msra.mxu0 %v689
        %715 = vmatpush.msra.mxu0 %v688
        %716 = vmatpush.msra.mxu0 %v687
        %717 = vmatpush.msra.mxu0 %v686
        %718 = vmatpush.msra.mxu0 %v685
        %719 = vmatpush.msra.mxu0 %v684
        %720 = vmatmul.f32.gmra.mxu0 %v652
        %v721 = vpop.f32.mrf.mxu0
        %v722 = vadd.f32 %v702, %v721
        %723 = vmatmul.f32.gmra.mxu0 %v653
        %v724 = vpop.f32.mrf.mxu0
        %v725 = vadd.f32 %v702, %v724
        %726 = vmatmul.f32.gmra.mxu0 %v654
        %v727 = vpop.f32.mrf.mxu0
        %v728 = vadd.f32 %v702, %v727
        %729 = vmatmul.f32.gmra.mxu0 %v655
        %v730 = vpop.f32.mrf.mxu0
        %v731 = vadd.f32 %v702, %v730
        %732 = vmatmul.f32.gmra.mxu0 %v656
        %v733 = vpop.f32.mrf.mxu0
        %v734 = vadd.f32 %v702, %v733
        %735 = vmatmul.f32.gmra.mxu0 %v657
        %v736 = vpop.f32.mrf.mxu0
        %v737 = vadd.f32 %v702, %v736
        %738 = vmatmul.f32.gmra.mxu0 %v658
        %v739 = vpop.f32.mrf.mxu0
        %v740 = vadd.f32 %v702, %v739
        %741 = vmatmul.f32.gmra.mxu0 %v659
        %v742 = vpop.f32.mrf.mxu0
        %v743 = vadd.f32 %v702, %v742
        %744 = vmatmul.f32.gmra.mxu0 %v660
        %v745 = vpop.f32.mrf.mxu0
        %v746 = vadd.f32 %v702, %v745
        %747 = vmatmul.f32.gmra.mxu0 %v661
        %v748 = vpop.f32.mrf.mxu0
        %v749 = vadd.f32 %v702, %v748
        %750 = vmatmul.f32.gmra.mxu0 %v662
        %v751 = vpop.f32.mrf.mxu0
        %v752 = vadd.f32 %v702, %v751
        %753 = vmatmul.f32.gmra.mxu0 %v663
        %v754 = vpop.f32.mrf.mxu0
        %v755 = vadd.f32 %v702, %v754
        %756 = vmatmul.f32.gmra.mxu0 %v664
        %v757 = vpop.f32.mrf.mxu0
        %v758 = vadd.f32 %v702, %v757
        %759 = vmatmul.f32.gmra.mxu0 %v665
        %v760 = vpop.f32.mrf.mxu0
        %v761 = vadd.f32 %v702, %v760
        %762 = vmatmul.f32.gmra.mxu0 %v666
        %v763 = vpop.f32.mrf.mxu0
        %v764 = vadd.f32 %v702, %v763
        %765 = vmatmul.f32.gmra.mxu0 %v667
        %v766 = vpop.f32.mrf.mxu0
        %v767 = vadd.f32 %v702, %v766
        %768 = vmatmul.f32.gmra.mxu0 %v668
        %v769 = vpop.f32.mrf.mxu0
        %v770 = vadd.f32 %v702, %v769
        %771 = vmatmul.f32.gmra.mxu0 %v669
        %v772 = vpop.f32.mrf.mxu0
        %v773 = vadd.f32 %v702, %v772
        %774 = vmatmul.f32.gmra.mxu0 %v670
        %v775 = vpop.f32.mrf.mxu0
        %v776 = vadd.f32 %v702, %v775
        %777 = vmatmul.f32.gmra.mxu0 %v671
        %v778 = vpop.f32.mrf.mxu0
        %v779 = vadd.f32 %v702, %v778
        %780 = vmatmul.f32.gmra.mxu0 %v672
        %v781 = vpop.f32.mrf.mxu0
        %v782 = vadd.f32 %v702, %v781
        %783 = vmatmul.f32.gmra.mxu0 %v673
        %v784 = vpop.f32.mrf.mxu0
        %v785 = vadd.f32 %v702, %v784
        %786 = vmatmul.f32.gmra.mxu0 %v674
        %v787 = vpop.f32.mrf.mxu0
        %v788 = vadd.f32 %v702, %v787
        %789 = vmatmul.f32.gmra.mxu0 %v675
        %v790 = vpop.f32.mrf.mxu0
        %v791 = vadd.f32 %v702, %v790
        %792 = vmatmul.f32.gmra.mxu0 %v676
        %v793 = vpop.f32.mrf.mxu0
        %v794 = vadd.f32 %v702, %v793
        %795 = vmatmul.f32.gmra.mxu0 %v677
        %v796 = vpop.f32.mrf.mxu0
        %v797 = vadd.f32 %v702, %v796
        %798 = vmatmul.f32.gmra.mxu0 %v678
        %v799 = vpop.f32.mrf.mxu0
        %v800 = vadd.f32 %v702, %v799
        %801 = vmatmul.f32.gmra.mxu0 %v679
        %v802 = vpop.f32.mrf.mxu0
        %v803 = vadd.f32 %v702, %v802
        %804 = vmatmul.f32.gmra.mxu0 %v680
        %v805 = vpop.f32.mrf.mxu0
        %v806 = vadd.f32 %v702, %v805
        %807 = vmatmul.f32.gmra.mxu0 %v681
        %v808 = vpop.f32.mrf.mxu0
        %v809 = vadd.f32 %v702, %v808
        %810 = vmatmul.f32.gmra.mxu0 %v682
        %v811 = vpop.f32.mrf.mxu0
        %v812 = vadd.f32 %v702, %v811
        %813 = vmatmul.f32.gmra.mxu0 %v683
        %v814 = vpop.f32.mrf.mxu0
        %v815 = vadd.f32 %v702, %v814
        %816 = vdwg.mxu0
        %vm817 = vcmp.ge.f32.partialorder %v722, 0.0
        %vm818 = vcmp.ge.f32.partialorder %v725, 0.0
        %vm819 = vcmp.ge.f32.partialorder %v728, 0.0
        %vm820 = vcmp.ge.f32.partialorder %v731, 0.0
        %vm821 = vcmp.ge.f32.partialorder %v734, 0.0
        %vm822 = vcmp.ge.f32.partialorder %v737, 0.0
        %vm823 = vcmp.ge.f32.partialorder %v740, 0.0
        %vm824 = vcmp.ge.f32.partialorder %v743, 0.0
        %vm825 = vcmp.ge.f32.partialorder %v746, 0.0
        %vm826 = vcmp.ge.f32.partialorder %v749, 0.0
        %vm827 = vcmp.ge.f32.partialorder %v752, 0.0
        %vm828 = vcmp.ge.f32.partialorder %v755, 0.0
        %vm829 = vcmp.ge.f32.partialorder %v758, 0.0
        %vm830 = vcmp.ge.f32.partialorder %v761, 0.0
        %vm831 = vcmp.ge.f32.partialorder %v764, 0.0
        %vm832 = vcmp.ge.f32.partialorder %v767, 0.0
        %vm833 = vcmp.ge.f32.partialorder %v770, 0.0
        %vm834 = vcmp.ge.f32.partialorder %v773, 0.0
        %vm835 = vcmp.ge.f32.partialorder %v776, 0.0
        %vm836 = vcmp.ge.f32.partialorder %v779, 0.0
        %vm837 = vcmp.ge.f32.partialorder %v782, 0.0
        %vm838 = vcmp.ge.f32.partialorder %v785, 0.0
        %vm839 = vcmp.ge.f32.partialorder %v788, 0.0
        %vm840 = vcmp.ge.f32.partialorder %v791, 0.0
        %vm841 = vcmp.ge.f32.partialorder %v794, 0.0
        %vm842 = vcmp.ge.f32.partialorder %v797, 0.0
        %vm843 = vcmp.ge.f32.partialorder %v800, 0.0
        %vm844 = vcmp.ge.f32.partialorder %v803, 0.0
        %vm845 = vcmp.ge.f32.partialorder %v806, 0.0
        %vm846 = vcmp.ge.f32.partialorder %v809, 0.0
        %vm847 = vcmp.ge.f32.partialorder %v812, 0.0
        %vm848 = vcmp.ge.f32.partialorder %v815, 0.0
        %v849 = vmul.f32 %v722, 0.1
        %v850 = vmul.f32 %v725, 0.1
        %v851 = vmul.f32 %v728, 0.1
        %v852 = vmul.f32 %v731, 0.1
        %v853 = vmul.f32 %v734, 0.1
        %v854 = vmul.f32 %v737, 0.1
        %v855 = vmul.f32 %v740, 0.1
        %v856 = vmul.f32 %v743, 0.1
        %v857 = vmul.f32 %v746, 0.1
        %v858 = vmul.f32 %v749, 0.1
        %v859 = vmul.f32 %v752, 0.1
        %v860 = vmul.f32 %v755, 0.1
        %v861 = vmul.f32 %v758, 0.1
        %v862 = vmul.f32 %v761, 0.1
        %v863 = vmul.f32 %v764, 0.1
        %v864 = vmul.f32 %v767, 0.1
        %v865 = vmul.f32 %v770, 0.1
        %v866 = vmul.f32 %v773, 0.1
        %v867 = vmul.f32 %v776, 0.1
        %v868 = vmul.f32 %v779, 0.1
        %v869 = vmul.f32 %v782, 0.1
        %v870 = vmul.f32 %v785, 0.1
        %v871 = vmul.f32 %v788, 0.1
        %v872 = vmul.f32 %v791, 0.1
        %v873 = vmul.f32 %v794, 0.1
        %v874 = vmul.f32 %v797, 0.1
        %v875 = vmul.f32 %v800, 0.1
        %v876 = vmul.f32 %v803, 0.1
        %v877 = vmul.f32 %v806, 0.1
        %v878 = vmul.f32 %v809, 0.1
        %v879 = vmul.f32 %v812, 0.1
        %v880 = vmul.f32 %v815, 0.1
        %v881 = vsel %vm817, %v722, %v849
        %v882 = vsel %vm818, %v725, %v850
        %v883 = vsel %vm819, %v728, %v851
        %v884 = vsel %vm820, %v731, %v852
        %v885 = vsel %vm821, %v734, %v853
        %v886 = vsel %vm822, %v737, %v854
        %v887 = vsel %vm823, %v740, %v855
        %v888 = vsel %vm824, %v743, %v856
        %v889 = vsel %vm825, %v746, %v857
        %v890 = vsel %vm826, %v749, %v858
        %v891 = vsel %vm827, %v752, %v859
        %v892 = vsel %vm828, %v755, %v860
        %v893 = vsel %vm829, %v758, %v861
        %v894 = vsel %vm830, %v761, %v862
        %v895 = vsel %vm831, %v764, %v863
        %v896 = vsel %vm832, %v767, %v864
        %v897 = vsel %vm833, %v770, %v865
        %v898 = vsel %vm834, %v773, %v866
        %v899 = vsel %vm835, %v776, %v867
        %v900 = vsel %vm836, %v779, %v868
        %v901 = vsel %vm837, %v782, %v869
        %v902 = vsel %vm838, %v785, %v870
        %v903 = vsel %vm839, %v788, %v871
        %v904 = vsel %vm840, %v791, %v872
        %v905 = vsel %vm841, %v794, %v873
        %v906 = vsel %vm842, %v797, %v874
        %v907 = vsel %vm843, %v800, %v875
        %v908 = vsel %vm844, %v803, %v876
        %v909 = vsel %vm845, %v806, %v877
        %v910 = vsel %vm846, %v809, %v878
        %v911 = vsel %vm847, %v812, %v879
        %v912 = vsel %vm848, %v815, %v880
        %v913 = vld [vmem:[%s5] sm:$0xff]
        %v914 = vld [vmem:[%s5 + $0x8] sm:$0xff]
        %v915 = vld [vmem:[%s5 + $0x10] sm:$0xff]
        %v916 = vld [vmem:[%s5 + $0x18] sm:$0xff]
        %v917 = vld [vmem:[%s5 + $0x20] sm:$0xff]
        %v918 = vld [vmem:[%s5 + $0x28] sm:$0xff]
        %v919 = vld [vmem:[%s5 + $0x30] sm:$0xff]
        %v920 = vld [vmem:[%s5 + $0x38] sm:$0xff]
        %v921 = vld [vmem:[%s5 + $0x40] sm:$0xff]
        %v922 = vld [vmem:[%s5 + $0x48] sm:$0xff]
        %v923 = vld [vmem:[%s5 + $0x50] sm:$0xff]
        %v924 = vld [vmem:[%s5 + $0x58] sm:$0xff]
        %v925 = vld [vmem:[%s5 + $0x60] sm:$0xff]
        %v926 = vld [vmem:[%s5 + $0x68] sm:$0xff]
        %v927 = vld [vmem:[%s5 + $0x70] sm:$0xff]
        %v928 = vld [vmem:[%s5 + $0x78] sm:$0xff]
        %v929 = vld [vmem:[%s6] sm:$0x1]
        %v931 = vperm.slane %v929, 0
        %933 = vmatpush.msra.mxu0 %v928
        %934 = vmatpush.msra.mxu0 %v927
        %935 = vmatpush.msra.mxu0 %v926
        %936 = vmatpush.msra.mxu0 %v925
        %937 = vmatpush.msra.mxu0 %v924
        %938 = vmatpush.msra.mxu0 %v923
        %939 = vmatpush.msra.mxu0 %v922
        %940 = vmatpush.msra.mxu0 %v921
        %941 = vmatpush.msra.mxu0 %v920
        %942 = vmatpush.msra.mxu0 %v919
        %943 = vmatpush.msra.mxu0 %v918
        %944 = vmatpush.msra.mxu0 %v917
        %945 = vmatpush.msra.mxu0 %v916
        %946 = vmatpush.msra.mxu0 %v915
        %947 = vmatpush.msra.mxu0 %v914
        %948 = vmatpush.msra.mxu0 %v913
        %949 = vmatmul.f32.gmra.mxu0 %v881
        %v950 = vpop.f32.mrf.mxu0
        %v951 = vadd.f32 %v931, %v950
        %952 = vmatmul.f32.gmra.mxu0 %v882
        %v953 = vpop.f32.mrf.mxu0
        %v954 = vadd.f32 %v931, %v953
        %955 = vmatmul.f32.gmra.mxu0 %v883
        %v956 = vpop.f32.mrf.mxu0
        %v957 = vadd.f32 %v931, %v956
        %958 = vmatmul.f32.gmra.mxu0 %v884
        %v959 = vpop.f32.mrf.mxu0
        %v960 = vadd.f32 %v931, %v959
        %961 = vmatmul.f32.gmra.mxu0 %v885
        %v962 = vpop.f32.mrf.mxu0
        %v963 = vadd.f32 %v931, %v962
        %964 = vmatmul.f32.gmra.mxu0 %v886
        %v965 = vpop.f32.mrf.mxu0
        %v966 = vadd.f32 %v931, %v965
        %967 = vmatmul.f32.gmra.mxu0 %v887
        %v968 = vpop.f32.mrf.mxu0
        %v969 = vadd.f32 %v931, %v968
        %970 = vmatmul.f32.gmra.mxu0 %v888
        %v971 = vpop.f32.mrf.mxu0
        %v972 = vadd.f32 %v931, %v971
        %973 = vmatmul.f32.gmra.mxu0 %v889
        %v974 = vpop.f32.mrf.mxu0
        %v975 = vadd.f32 %v931, %v974
        %976 = vmatmul.f32.gmra.mxu0 %v890
        %v977 = vpop.f32.mrf.mxu0
        %v978 = vadd.f32 %v931, %v977
        %979 = vmatmul.f32.gmra.mxu0 %v891
        %v980 = vpop.f32.mrf.mxu0
        %v981 = vadd.f32 %v931, %v980
        %982 = vmatmul.f32.gmra.mxu0 %v892
        %v983 = vpop.f32.mrf.mxu0
        %v984 = vadd.f32 %v931, %v983
        %985 = vmatmul.f32.gmra.mxu0 %v893
        %v986 = vpop.f32.mrf.mxu0
        %v987 = vadd.f32 %v931, %v986
        %988 = vmatmul.f32.gmra.mxu0 %v894
        %v989 = vpop.f32.mrf.mxu0
        %v990 = vadd.f32 %v931, %v989
        %991 = vmatmul.f32.gmra.mxu0 %v895
        %v992 = vpop.f32.mrf.mxu0
        %v993 = vadd.f32 %v931, %v992
        %994 = vmatmul.f32.gmra.mxu0 %v896
        %v995 = vpop.f32.mrf.mxu0
        %v996 = vadd.f32 %v931, %v995
        %997 = vmatmul.f32.gmra.mxu0 %v897
        %v998 = vpop.f32.mrf.mxu0
        %v999 = vadd.f32 %v931, %v998
        %1000 = vmatmul.f32.gmra.mxu0 %v898
        %v1001 = vpop.f32.mrf.mxu0
        %v1002 = vadd.f32 %v931, %v1001
        %1003 = vmatmul.f32.gmra.mxu0 %v899
        %v1004 = vpop.f32.mrf.mxu0
        %v1005 = vadd.f32 %v931, %v1004
        %1006 = vmatmul.f32.gmra.mxu0 %v900
        %v1007 = vpop.f32.mrf.mxu0
        %v1008 = vadd.f32 %v931, %v1007
        %1009 = vmatmul.f32.gmra.mxu0 %v901
        %v1010 = vpop.f32.mrf.mxu0
        %v1011 = vadd.f32 %v931, %v1010
        %1012 = vmatmul.f32.gmra.mxu0 %v902
        %v1013 = vpop.f32.mrf.mxu0
        %v1014 = vadd.f32 %v931, %v1013
        %1015 = vmatmul.f32.gmra.mxu0 %v903
        %v1016 = vpop.f32.mrf.mxu0
        %v1017 = vadd.f32 %v931, %v1016
        %1018 = vmatmul.f32.gmra.mxu0 %v904
        %v1019 = vpop.f32.mrf.mxu0
        %v1020 = vadd.f32 %v931, %v1019
        %1021 = vmatmul.f32.gmra.mxu0 %v905
        %v1022 = vpop.f32.mrf.mxu0
        %v1023 = vadd.f32 %v931, %v1022
        %1024 = vmatmul.f32.gmra.mxu0 %v906
        %v1025 = vpop.f32.mrf.mxu0
        %v1026 = vadd.f32 %v931, %v1025
        %1027 = vmatmul.f32.gmra.mxu0 %v907
        %v1028 = vpop.f32.mrf.mxu0
        %v1029 = vadd.f32 %v931, %v1028
        %1030 = vmatmul.f32.gmra.mxu0 %v908
        %v1031 = vpop.f32.mrf.mxu0
        %v1032 = vadd.f32 %v931, %v1031
        %1033 = vmatmul.f32.gmra.mxu0 %v909
        %v1034 = vpop.f32.mrf.mxu0
        %v1035 = vadd.f32 %v931, %v1034
        %1036 = vmatmul.f32.gmra.mxu0 %v910
        %v1037 = vpop.f32.mrf.mxu0
        %v1038 = vadd.f32 %v931, %v1037
        %1039 = vmatmul.f32.gmra.mxu0 %v911
        %v1040 = vpop.f32.mrf.mxu0
        %v1041 = vadd.f32 %v931, %v1040
        %1042 = vmatmul.f32.gmra.mxu0 %v912
        %v1043 = vpop.f32.mrf.mxu0
        %v1044 = vadd.f32 %v931, %v1043
        %1045 = vdwg.mxu0
        %vm1046 = vcmp.ge.f32.partialorder %v951, 0.0
        %vm1047 = vcmp.ge.f32.partialorder %v954, 0.0
        %vm1048 = vcmp.ge.f32.partialorder %v957, 0.0
        %vm1049 = vcmp.ge.f32.partialorder %v960, 0.0
        %vm1050 = vcmp.ge.f32.partialorder %v963, 0.0
        %vm1051 = vcmp.ge.f32.partialorder %v966, 0.0
        %vm1052 = vcmp.ge.f32.partialorder %v969, 0.0
        %vm1053 = vcmp.ge.f32.partialorder %v972, 0.0
        %vm1054 = vcmp.ge.f32.partialorder %v975, 0.0
        %vm1055 = vcmp.ge.f32.partialorder %v978, 0.0
        %vm1056 = vcmp.ge.f32.partialorder %v981, 0.0
        %vm1057 = vcmp.ge.f32.partialorder %v984, 0.0
        %vm1058 = vcmp.ge.f32.partialorder %v987, 0.0
        %vm1059 = vcmp.ge.f32.partialorder %v990, 0.0
        %vm1060 = vcmp.ge.f32.partialorder %v993, 0.0
        %vm1061 = vcmp.ge.f32.partialorder %v996, 0.0
        %vm1062 = vcmp.ge.f32.partialorder %v999, 0.0
        %vm1063 = vcmp.ge.f32.partialorder %v1002, 0.0
        %vm1064 = vcmp.ge.f32.partialorder %v1005, 0.0
        %vm1065 = vcmp.ge.f32.partialorder %v1008, 0.0
        %vm1066 = vcmp.ge.f32.partialorder %v1011, 0.0
        %vm1067 = vcmp.ge.f32.partialorder %v1014, 0.0
        %vm1068 = vcmp.ge.f32.partialorder %v1017, 0.0
        %vm1069 = vcmp.ge.f32.partialorder %v1020, 0.0
        %vm1070 = vcmp.ge.f32.partialorder %v1023, 0.0
        %vm1071 = vcmp.ge.f32.partialorder %v1026, 0.0
        %vm1072 = vcmp.ge.f32.partialorder %v1029, 0.0
        %vm1073 = vcmp.ge.f32.partialorder %v1032, 0.0
        %vm1074 = vcmp.ge.f32.partialorder %v1035, 0.0
        %vm1075 = vcmp.ge.f32.partialorder %v1038, 0.0
        %vm1076 = vcmp.ge.f32.partialorder %v1041, 0.0
        %vm1077 = vcmp.ge.f32.partialorder %v1044, 0.0
        %v1078 = vmul.f32 %v951, 0.1
        %v1079 = vmul.f32 %v954, 0.1
        %v1080 = vmul.f32 %v957, 0.1
        %v1081 = vmul.f32 %v960, 0.1
        %v1082 = vmul.f32 %v963, 0.1
        %v1083 = vmul.f32 %v966, 0.1
        %v1084 = vmul.f32 %v969, 0.1
        %v1085 = vmul.f32 %v972, 0.1
        %v1086 = vmul.f32 %v975, 0.1
        %v1087 = vmul.f32 %v978, 0.1
        %v1088 = vmul.f32 %v981, 0.1
        %v1089 = vmul.f32 %v984, 0.1
        %v1090 = vmul.f32 %v987, 0.1
        %v1091 = vmul.f32 %v990, 0.1
        %v1092 = vmul.f32 %v993, 0.1
        %v1093 = vmul.f32 %v996, 0.1
        %v1094 = vmul.f32 %v999, 0.1
        %v1095 = vmul.f32 %v1002, 0.1
        %v1096 = vmul.f32 %v1005, 0.1
        %v1097 = vmul.f32 %v1008, 0.1
        %v1098 = vmul.f32 %v1011, 0.1
        %v1099 = vmul.f32 %v1014, 0.1
        %v1100 = vmul.f32 %v1017, 0.1
        %v1101 = vmul.f32 %v1020, 0.1
        %v1102 = vmul.f32 %v1023, 0.1
        %v1103 = vmul.f32 %v1026, 0.1
        %v1104 = vmul.f32 %v1029, 0.1
        %v1105 = vmul.f32 %v1032, 0.1
        %v1106 = vmul.f32 %v1035, 0.1
        %v1107 = vmul.f32 %v1038, 0.1
        %v1108 = vmul.f32 %v1041, 0.1
        %v1109 = vmul.f32 %v1044, 0.1
        %v1110 = vsel %vm1046, %v951, %v1078
        %v1111 = vsel %vm1047, %v954, %v1079
        %v1112 = vsel %vm1048, %v957, %v1080
        %v1113 = vsel %vm1049, %v960, %v1081
        %v1114 = vsel %vm1050, %v963, %v1082
        %v1115 = vsel %vm1051, %v966, %v1083
        %v1116 = vsel %vm1052, %v969, %v1084
        %v1117 = vsel %vm1053, %v972, %v1085
        %v1118 = vsel %vm1054, %v975, %v1086
        %v1119 = vsel %vm1055, %v978, %v1087
        %v1120 = vsel %vm1056, %v981, %v1088
        %v1121 = vsel %vm1057, %v984, %v1089
        %v1122 = vsel %vm1058, %v987, %v1090
        %v1123 = vsel %vm1059, %v990, %v1091
        %v1124 = vsel %vm1060, %v993, %v1092
        %v1125 = vsel %vm1061, %v996, %v1093
        %v1126 = vsel %vm1062, %v999, %v1094
        %v1127 = vsel %vm1063, %v1002, %v1095
        %v1128 = vsel %vm1064, %v1005, %v1096
        %v1129 = vsel %vm1065, %v1008, %v1097
        %v1130 = vsel %vm1066, %v1011, %v1098
        %v1131 = vsel %vm1067, %v1014, %v1099
        %v1132 = vsel %vm1068, %v1017, %v1100
        %v1133 = vsel %vm1069, %v1020, %v1101
        %v1134 = vsel %vm1070, %v1023, %v1102
        %v1135 = vsel %vm1071, %v1026, %v1103
        %v1136 = vsel %vm1072, %v1029, %v1104
        %v1137 = vsel %vm1073, %v1032, %v1105
        %v1138 = vsel %vm1074, %v1035, %v1106
        %v1139 = vsel %vm1075, %v1038, %v1107
        %v1140 = vsel %vm1076, %v1041, %v1108
        %v1141 = vsel %vm1077, %v1044, %v1109
        %v1142 = vld [vmem:[%s7] sm:$0xff]
        %v1143 = vld [vmem:[%s7 + $0x8] sm:$0xff]
        %v1144 = vld [vmem:[%s7 + $0x10] sm:$0xff]
        %v1145 = vld [vmem:[%s7 + $0x18] sm:$0xff]
        %v1146 = vld [vmem:[%s7 + $0x20] sm:$0xff]
        %v1147 = vld [vmem:[%s7 + $0x28] sm:$0xff]
        %v1148 = vld [vmem:[%s7 + $0x30] sm:$0xff]
        %v1149 = vld [vmem:[%s7 + $0x38] sm:$0xff]
        %v1150 = vld [vmem:[%s7 + $0x40] sm:$0xff]
        %v1151 = vld [vmem:[%s7 + $0x48] sm:$0xff]
        %v1152 = vld [vmem:[%s7 + $0x50] sm:$0xff]
        %v1153 = vld [vmem:[%s7 + $0x58] sm:$0xff]
        %v1154 = vld [vmem:[%s7 + $0x60] sm:$0xff]
        %v1155 = vld [vmem:[%s7 + $0x68] sm:$0xff]
        %v1156 = vld [vmem:[%s7 + $0x70] sm:$0xff]
        %v1157 = vld [vmem:[%s7 + $0x78] sm:$0xff]
        %v1158 = vld [vmem:[%s8] sm:$0x1]
        %v1160 = vperm.slane %v1158, 0
        %1162 = vmatpush.msra.mxu0 %v1157
        %1163 = vmatpush.msra.mxu0 %v1156
        %1164 = vmatpush.msra.mxu0 %v1155
        %1165 = vmatpush.msra.mxu0 %v1154
        %1166 = vmatpush.msra.mxu0 %v1153
        %1167 = vmatpush.msra.mxu0 %v1152
        %1168 = vmatpush.msra.mxu0 %v1151
        %1169 = vmatpush.msra.mxu0 %v1150
        %1170 = vmatpush.msra.mxu0 %v1149
        %1171 = vmatpush.msra.mxu0 %v1148
        %1172 = vmatpush.msra.mxu0 %v1147
        %1173 = vmatpush.msra.mxu0 %v1146
        %1174 = vmatpush.msra.mxu0 %v1145
        %1175 = vmatpush.msra.mxu0 %v1144
        %1176 = vmatpush.msra.mxu0 %v1143
        %1177 = vmatpush.msra.mxu0 %v1142
        %1178 = vmatmul.f32.gmra.mxu0 %v1110
        %v1179 = vpop.f32.mrf.mxu0
        %v1180 = vadd.f32 %v1160, %v1179
        %1181 = vmatmul.f32.gmra.mxu0 %v1111
        %v1182 = vpop.f32.mrf.mxu0
        %v1183 = vadd.f32 %v1160, %v1182
        %1184 = vmatmul.f32.gmra.mxu0 %v1112
        %v1185 = vpop.f32.mrf.mxu0
        %v1186 = vadd.f32 %v1160, %v1185
        %1187 = vmatmul.f32.gmra.mxu0 %v1113
        %v1188 = vpop.f32.mrf.mxu0
        %v1189 = vadd.f32 %v1160, %v1188
        %1190 = vmatmul.f32.gmra.mxu0 %v1114
        %v1191 = vpop.f32.mrf.mxu0
        %v1192 = vadd.f32 %v1160, %v1191
        %1193 = vmatmul.f32.gmra.mxu0 %v1115
        %v1194 = vpop.f32.mrf.mxu0
        %v1195 = vadd.f32 %v1160, %v1194
        %1196 = vmatmul.f32.gmra.mxu0 %v1116
        %v1197 = vpop.f32.mrf.mxu0
        %v1198 = vadd.f32 %v1160, %v1197
        %1199 = vmatmul.f32.gmra.mxu0 %v1117
        %v1200 = vpop.f32.mrf.mxu0
        %v1201 = vadd.f32 %v1160, %v1200
        %1202 = vmatmul.f32.gmra.mxu0 %v1118
        %v1203 = vpop.f32.mrf.mxu0
        %v1204 = vadd.f32 %v1160, %v1203
        %1205 = vmatmul.f32.gmra.mxu0 %v1119
        %v1206 = vpop.f32.mrf.mxu0
        %v1207 = vadd.f32 %v1160, %v1206
        %1208 = vmatmul.f32.gmra.mxu0 %v1120
        %v1209 = vpop.f32.mrf.mxu0
        %v1210 = vadd.f32 %v1160, %v1209
        %1211 = vmatmul.f32.gmra.mxu0 %v1121
        %v1212 = vpop.f32.mrf.mxu0
        %v1213 = vadd.f32 %v1160, %v1212
        %1214 = vmatmul.f32.gmra.mxu0 %v1122
        %v1215 = vpop.f32.mrf.mxu0
        %v1216 = vadd.f32 %v1160, %v1215
        %1217 = vmatmul.f32.gmra.mxu0 %v1123
        %v1218 = vpop.f32.mrf.mxu0
        %v1219 = vadd.f32 %v1160, %v1218
        %1220 = vmatmul.f32.gmra.mxu0 %v1124
        %v1221 = vpop.f32.mrf.mxu0
        %v1222 = vadd.f32 %v1160, %v1221
        %1223 = vmatmul.f32.gmra.mxu0 %v1125
        %v1224 = vpop.f32.mrf.mxu0
        %v1225 = vadd.f32 %v1160, %v1224
        %1226 = vmatmul.f32.gmra.mxu0 %v1126
        %v1227 = vpop.f32.mrf.mxu0
        %v1228 = vadd.f32 %v1160, %v1227
        %1229 = vmatmul.f32.gmra.mxu0 %v1127
        %v1230 = vpop.f32.mrf.mxu0
        %v1231 = vadd.f32 %v1160, %v1230
        %1232 = vmatmul.f32.gmra.mxu0 %v1128
        %v1233 = vpop.f32.mrf.mxu0
        %v1234 = vadd.f32 %v1160, %v1233
        %1235 = vmatmul.f32.gmra.mxu0 %v1129
        %v1236 = vpop.f32.mrf.mxu0
        %v1237 = vadd.f32 %v1160, %v1236
        %1238 = vmatmul.f32.gmra.mxu0 %v1130
        %v1239 = vpop.f32.mrf.mxu0
        %v1240 = vadd.f32 %v1160, %v1239
        %1241 = vmatmul.f32.gmra.mxu0 %v1131
        %v1242 = vpop.f32.mrf.mxu0
        %v1243 = vadd.f32 %v1160, %v1242
        %1244 = vmatmul.f32.gmra.mxu0 %v1132
        %v1245 = vpop.f32.mrf.mxu0
        %v1246 = vadd.f32 %v1160, %v1245
        %1247 = vmatmul.f32.gmra.mxu0 %v1133
        %v1248 = vpop.f32.mrf.mxu0
        %v1249 = vadd.f32 %v1160, %v1248
        %1250 = vmatmul.f32.gmra.mxu0 %v1134
        %v1251 = vpop.f32.mrf.mxu0
        %v1252 = vadd.f32 %v1160, %v1251
        %1253 = vmatmul.f32.gmra.mxu0 %v1135
        %v1254 = vpop.f32.mrf.mxu0
        %v1255 = vadd.f32 %v1160, %v1254
        %1256 = vmatmul.f32.gmra.mxu0 %v1136
        %v1257 = vpop.f32.mrf.mxu0
        %v1258 = vadd.f32 %v1160, %v1257
        %1259 = vmatmul.f32.gmra.mxu0 %v1137
        %v1260 = vpop.f32.mrf.mxu0
        %v1261 = vadd.f32 %v1160, %v1260
        %1262 = vmatmul.f32.gmra.mxu0 %v1138
        %v1263 = vpop.f32.mrf.mxu0
        %v1264 = vadd.f32 %v1160, %v1263
        %1265 = vmatmul.f32.gmra.mxu0 %v1139
        %v1266 = vpop.f32.mrf.mxu0
        %v1267 = vadd.f32 %v1160, %v1266
        %1268 = vmatmul.f32.gmra.mxu0 %v1140
        %v1269 = vpop.f32.mrf.mxu0
        %v1270 = vadd.f32 %v1160, %v1269
        %1271 = vmatmul.f32.gmra.mxu0 %v1141
        %v1272 = vpop.f32.mrf.mxu0
        %v1273 = vadd.f32 %v1160, %v1272
        %1274 = vdwg.mxu0
        %vm1275 = vcmp.ge.f32.partialorder %v1180, 0.0
        %vm1276 = vcmp.ge.f32.partialorder %v1183, 0.0
        %vm1277 = vcmp.ge.f32.partialorder %v1186, 0.0
        %vm1278 = vcmp.ge.f32.partialorder %v1189, 0.0
        %vm1279 = vcmp.ge.f32.partialorder %v1192, 0.0
        %vm1280 = vcmp.ge.f32.partialorder %v1195, 0.0
        %vm1281 = vcmp.ge.f32.partialorder %v1198, 0.0
        %vm1282 = vcmp.ge.f32.partialorder %v1201, 0.0
        %vm1283 = vcmp.ge.f32.partialorder %v1204, 0.0
        %vm1284 = vcmp.ge.f32.partialorder %v1207, 0.0
        %vm1285 = vcmp.ge.f32.partialorder %v1210, 0.0
        %vm1286 = vcmp.ge.f32.partialorder %v1213, 0.0
        %vm1287 = vcmp.ge.f32.partialorder %v1216, 0.0
        %vm1288 = vcmp.ge.f32.partialorder %v1219, 0.0
        %vm1289 = vcmp.ge.f32.partialorder %v1222, 0.0
        %vm1290 = vcmp.ge.f32.partialorder %v1225, 0.0
        %vm1291 = vcmp.ge.f32.partialorder %v1228, 0.0
        %vm1292 = vcmp.ge.f32.partialorder %v1231, 0.0
        %vm1293 = vcmp.ge.f32.partialorder %v1234, 0.0
        %vm1294 = vcmp.ge.f32.partialorder %v1237, 0.0
        %vm1295 = vcmp.ge.f32.partialorder %v1240, 0.0
        %vm1296 = vcmp.ge.f32.partialorder %v1243, 0.0
        %vm1297 = vcmp.ge.f32.partialorder %v1246, 0.0
        %vm1298 = vcmp.ge.f32.partialorder %v1249, 0.0
        %vm1299 = vcmp.ge.f32.partialorder %v1252, 0.0
        %vm1300 = vcmp.ge.f32.partialorder %v1255, 0.0
        %vm1301 = vcmp.ge.f32.partialorder %v1258, 0.0
        %vm1302 = vcmp.ge.f32.partialorder %v1261, 0.0
        %vm1303 = vcmp.ge.f32.partialorder %v1264, 0.0
        %vm1304 = vcmp.ge.f32.partialorder %v1267, 0.0
        %vm1305 = vcmp.ge.f32.partialorder %v1270, 0.0
        %vm1306 = vcmp.ge.f32.partialorder %v1273, 0.0
        %v1307 = vmul.f32 %v1180, 0.1
        %v1308 = vmul.f32 %v1183, 0.1
        %v1309 = vmul.f32 %v1186, 0.1
        %v1310 = vmul.f32 %v1189, 0.1
        %v1311 = vmul.f32 %v1192, 0.1
        %v1312 = vmul.f32 %v1195, 0.1
        %v1313 = vmul.f32 %v1198, 0.1
        %v1314 = vmul.f32 %v1201, 0.1
        %v1315 = vmul.f32 %v1204, 0.1
        %v1316 = vmul.f32 %v1207, 0.1
        %v1317 = vmul.f32 %v1210, 0.1
        %v1318 = vmul.f32 %v1213, 0.1
        %v1319 = vmul.f32 %v1216, 0.1
        %v1320 = vmul.f32 %v1219, 0.1
        %v1321 = vmul.f32 %v1222, 0.1
        %v1322 = vmul.f32 %v1225, 0.1
        %v1323 = vmul.f32 %v1228, 0.1
        %v1324 = vmul.f32 %v1231, 0.1
        %v1325 = vmul.f32 %v1234, 0.1
        %v1326 = vmul.f32 %v1237, 0.1
        %v1327 = vmul.f32 %v1240, 0.1
        %v1328 = vmul.f32 %v1243, 0.1
        %v1329 = vmul.f32 %v1246, 0.1
        %v1330 = vmul.f32 %v1249, 0.1
        %v1331 = vmul.f32 %v1252, 0.1
        %v1332 = vmul.f32 %v1255, 0.1
        %v1333 = vmul.f32 %v1258, 0.1
        %v1334 = vmul.f32 %v1261, 0.1
        %v1335 = vmul.f32 %v1264, 0.1
        %v1336 = vmul.f32 %v1267, 0.1
        %v1337 = vmul.f32 %v1270, 0.1
        %v1338 = vmul.f32 %v1273, 0.1
        %v1339 = vsel %vm1275, %v1180, %v1307
        %v1340 = vsel %vm1276, %v1183, %v1308
        %v1341 = vsel %vm1277, %v1186, %v1309
        %v1342 = vsel %vm1278, %v1189, %v1310
        %v1343 = vsel %vm1279, %v1192, %v1311
        %v1344 = vsel %vm1280, %v1195, %v1312
        %v1345 = vsel %vm1281, %v1198, %v1313
        %v1346 = vsel %vm1282, %v1201, %v1314
        %v1347 = vsel %vm1283, %v1204, %v1315
        %v1348 = vsel %vm1284, %v1207, %v1316
        %v1349 = vsel %vm1285, %v1210, %v1317
        %v1350 = vsel %vm1286, %v1213, %v1318
        %v1351 = vsel %vm1287, %v1216, %v1319
        %v1352 = vsel %vm1288, %v1219, %v1320
        %v1353 = vsel %vm1289, %v1222, %v1321
        %v1354 = vsel %vm1290, %v1225, %v1322
        %v1355 = vsel %vm1291, %v1228, %v1323
        %v1356 = vsel %vm1292, %v1231, %v1324
        %v1357 = vsel %vm1293, %v1234, %v1325
        %v1358 = vsel %vm1294, %v1237, %v1326
        %v1359 = vsel %vm1295, %v1240, %v1327
        %v1360 = vsel %vm1296, %v1243, %v1328
        %v1361 = vsel %vm1297, %v1246, %v1329
        %v1362 = vsel %vm1298, %v1249, %v1330
        %v1363 = vsel %vm1299, %v1252, %v1331
        %v1364 = vsel %vm1300, %v1255, %v1332
        %v1365 = vsel %vm1301, %v1258, %v1333
        %v1366 = vsel %vm1302, %v1261, %v1334
        %v1367 = vsel %vm1303, %v1264, %v1335
        %v1368 = vsel %vm1304, %v1267, %v1336
        %v1369 = vsel %vm1305, %v1270, %v1337
        %v1370 = vsel %vm1306, %v1273, %v1338
        %1371 = vst [vmem:[%s326] sm:$0xff] %v1339
        %1372 = vst [vmem:[%s326 + $0x8] sm:$0xff] %v1340
        %1373 = vst [vmem:[%s326 + $0x10] sm:$0xff] %v1341
        %1374 = vst [vmem:[%s326 + $0x18] sm:$0xff] %v1342
        %1375 = vst [vmem:[%s326 + $0x20] sm:$0xff] %v1343
        %1376 = vst [vmem:[%s326 + $0x28] sm:$0xff] %v1344
        %1377 = vst [vmem:[%s326 + $0x30] sm:$0xff] %v1345
        %1378 = vst [vmem:[%s326 + $0x38] sm:$0xff] %v1346
        %1379 = vst [vmem:[%s326 + $0x40] sm:$0xff] %v1347
        %1380 = vst [vmem:[%s326 + $0x48] sm:$0xff] %v1348
        %1381 = vst [vmem:[%s326 + $0x50] sm:$0xff] %v1349
        %1382 = vst [vmem:[%s326 + $0x58] sm:$0xff] %v1350
        %1383 = vst [vmem:[%s326 + $0x60] sm:$0xff] %v1351
        %1384 = vst [vmem:[%s326 + $0x68] sm:$0xff] %v1352
        %1385 = vst [vmem:[%s326 + $0x70] sm:$0xff] %v1353
        %1386 = vst [vmem:[%s326 + $0x78] sm:$0xff] %v1354
        %1387 = vst [vmem:[%s326 + $0x80] sm:$0xff] %v1355
        %1388 = vst [vmem:[%s326 + $0x88] sm:$0xff] %v1356
        %1389 = vst [vmem:[%s326 + $0x90] sm:$0xff] %v1357
        %1390 = vst [vmem:[%s326 + $0x98] sm:$0xff] %v1358
        %1391 = vst [vmem:[%s326 + $0xa0] sm:$0xff] %v1359
        %1392 = vst [vmem:[%s326 + $0xa8] sm:$0xff] %v1360
        %1393 = vst [vmem:[%s326 + $0xb0] sm:$0xff] %v1361
        %1394 = vst [vmem:[%s326 + $0xb8] sm:$0xff] %v1362
        %1395 = vst [vmem:[%s326 + $0xc0] sm:$0xff] %v1363
        %1396 = vst [vmem:[%s326 + $0xc8] sm:$0xff] %v1364
        %1397 = vst [vmem:[%s326 + $0xd0] sm:$0xff] %v1365
        %1398 = vst [vmem:[%s326 + $0xd8] sm:$0xff] %v1366
        %1399 = vst [vmem:[%s326 + $0xe0] sm:$0xff] %v1367
        %1400 = vst [vmem:[%s326 + $0xe8] sm:$0xff] %v1368
        %1401 = vst [vmem:[%s326 + $0xf0] sm:$0xff] %v1369
        %1402 = vst [vmem:[%s326 + $0xf8] sm:$0xff] %v1370
        %s1403 = sand.u32 %s225, 1
        %s1404 = scalar_lea.sflag [#allocation3], %s1403
        %s1405 = sand.u32 %s225, 1
        %s1406 = smul.addr %s1405, 256
        %s1407 = scalar_lea.vmem [#allocation2], %s1406
        // Predicated region
        $region57: #{tpu_custom_call.1} parent=55 // pred_check
          %p1408 = pneg %p235
        $region58: #{tpu_custom_call.1} parent=55 // pred_check_branch
          %1410 = sbr.rel (%p1408) target = $region60
        $region59: #{tpu_custom_call.1} parent=55 // pred_region
          %s1411 = smul.u32 32, %s23
          %1413 = vsyncadd %s1404, 0
          %s1414 = smul.addr %s1411, 8
          %s1415 = scalar_lea.hbm %s9, %s1414
          %s1416 = sshll.u32 %s1407, 4
          %s1417 = int_to_ptr.vmem [resolvable:$true] %s1416
          %s1418 = sshll.u32 %s1415, 4
          %s1419 = int_to_ptr.hbm [resolvable:$true] %s1418
          %1424 = dma.vmem_to_hbm [thread:$0]  %s1417, 4096, %s1419, %s1404, 128, 128, 8
        $region60: #{tpu_custom_call.1} parent=55 // pred_fallthru
          _
      $region56: #{tpu_custom_call.1} parent=5 // pred_fallthru
        _
      %p1425 = scmp.le.s32.totalorder 2, %s18
      // Predicated region
      $region61: #{tpu_custom_call.1} parent=5 // pred_check
        %p1426 = pneg %p1425
      $region62: #{tpu_custom_call.1} parent=5 // pred_check_branch
        %1428 = sbr.rel (%p1426) target = $region64
      $region63: #{tpu_custom_call.1} parent=5 // pred_region
        %s1429 = ssub.s32 %s18, 2
        // Predicated region
        $region65: #{tpu_custom_call.1} parent=63 // pred_check
          %p1430 = pneg %p241
        $region66: #{tpu_custom_call.1} parent=63 // pred_check_branch
          %1432 = sbr.rel (%p1430) target = $region68
        $region67: #{tpu_custom_call.1} parent=63 // pred_region
          %s1433 = sand.u32 %s226, 1
          %s1434 = scalar_lea.sflag [#allocation3], %s1433
          %s1435 = sand.u32 %s226, 1
          %s1436 = smul.addr %s1435, 256
          %s1437 = scalar_lea.vmem [#allocation2], %s1436
          %1439 = dma.done %s1434, 4096
        $region68: #{tpu_custom_call.1} parent=63 // pred_fallthru
          _
      $region64: #{tpu_custom_call.1} parent=5 // pred_fallthru
        _
    $region6: #{tpu_custom_call.1} parent=1 // loop_footer
      %s22 = sadd.s32 1, %s18
    $region7: #{tpu_custom_call.1} parent=1 // loop_footer_branch
      %17 = sbr.rel target = $region3
    $region8: #{tpu_custom_call.1} parent=1 // loop_exit
      _
    %1440 = vsyncpa [#allocation3], 1
    %s1441 = scalar_lea.sflag [#allocation3], 1
    %1442 = vsyncpa %s1441, 1

</llo_original>
